<compile_context>
chip_gen: v5e
topology: v5e:2x2
jax: 0.10.0
libtpu: 0.0.40
codegen_flags: <defaults>
</compile_context>

<pallas_src>
import functools

import jax
import jax.numpy as jnp
from jax import lax
from jax.experimental import pallas as pl
from jax.experimental.pallas import tpu as pltpu


# --------------------------------------------------------------------------- #
# helpers
# --------------------------------------------------------------------------- #
def _ceil_to(x, m):
    return ((x + m - 1) // m) * m


def _vmem_tile_bytes(rows, cols, itemsize=4):
    # VMEM stores (8, 128)-tiled data: sublane dim pads to 8, lane dim to 128.
    return _ceil_to(max(int(rows), 1), 8) * _ceil_to(max(int(cols), 1), 128) * itemsize


def _vmem_capacity_bytes():
    try:
        return int(pltpu.get_tpu_info().vmem_capacity_bytes)
    except Exception:
        return 64 * 1024 * 1024            # conservative (v7x-sized) default


def _estimate_step_vmem(d, t, k_pad, kc, z_itemsize):
    io = 2 * 2 * _vmem_tile_bytes(d, t, z_itemsize)        # z in + zq out, double-buffered
    io += 2 * _vmem_tile_bytes(1, t, 4)                     # idx out, double-buffered
    cb = (_vmem_tile_bytes(k_pad, d) + _vmem_tile_bytes(k_pad, 1)
          + _vmem_tile_bytes(d, k_pad))
    cb *= 2                                                 # worst case: codebook double-buffered
    tmp = 6 * _vmem_tile_bytes(kc, t) + 3 * _vmem_tile_bytes(d, t)
    return io + cb + tmp + (1 << 20)


def _pick_spatial_tile(hw_pad, d, k_pad, kc, z_itemsize, budget):
    cands = sorted({t for t in (hw_pad, 8192, 4096, 2048, 1024, 512, 256, 128)
                    if t <= hw_pad and hw_pad % t == 0}, reverse=True)
    for t in cands:
        if _estimate_step_vmem(d, t, k_pad, kc, z_itemsize) <= budget:
            return t
    return cands[-1]


# --------------------------------------------------------------------------- #
# kernel
# --------------------------------------------------------------------------- #
def _make_vq_kernel(kc, n_chunks, int_argmin):
    """Builds the VQ kernel body.

    Refs:
      z_ref:      (1, D, T)   input tile, code-major (spatial positions on lanes)
      wneg2t_ref: (K_pad, D)  -2 * W^T  (rows past K are zero)
      wsq_ref:    (K_pad, 1)  ||w_k||^2 (rows past K hold a huge sentinel)
      w_ref:      (D, K_pad)  codebook  (columns past K are zero)
      zq_ref:     (1, D, T)   quantized output tile
      idx_ref:    (1, 1, T)   int32 code indices (lane-dense)
    """

    def kernel(z_ref, wneg2t_ref, wsq_ref, w_ref, zq_ref, idx_ref):
        D = z_ref.shape[1]
        T = z_ref.shape[2]
        zt = z_ref[0].astype(jnp.float32)                                # (D, T)

        def pick(w2, sq):
            # scores for one codebook chunk (argmin == nearest code since the
            # dropped ||z_t||^2 term is constant per column)
            s = jnp.dot(w2, zt, preferred_element_type=jnp.float32) + sq  # (kc, T)  MXU + VPU
            cm = jnp.min(s, axis=0, keepdims=True)                        # (1, T)
            rows = s.shape[0]
            iota = lax.broadcasted_iota(jnp.int32, s.shape, 0)
            if int_argmin:
                # first-match argmin, integer-only (no (kc,T) float iota/cast)
                loc = jnp.min(jnp.where(s == cm, iota, rows),
                              axis=0, keepdims=True)                      # (1, T) int32
            else:
                iota_f = iota.astype(jnp.float32)
                loc = jnp.min(jnp.where(s == cm, iota_f, float(rows)),
                              axis=0, keepdims=True).astype(jnp.int32)
            enc = (iota == loc).astype(jnp.float32)                       # (kc, T) exact one-hot
            return cm, loc, enc

        if n_chunks == 1:
            _, loc, enc = pick(wneg2t_ref[...], wsq_ref[...])
            zq = jnp.dot(w_ref[...].astype(jnp.float32), enc,
                         preferred_element_type=jnp.float32)              # (D, T)  MXU
            idx = loc
        else:
            # flash-style online argmin over codebook chunks: only (1,T)/(D,T)
            # carries stay live, never a full (K, T) intermediate.
            def body(c, carry):
                m, idx, zq = carry
                k0 = pl.multiple_of(c * kc, kc)
                cm, loc, enc = pick(wneg2t_ref[pl.ds(k0, kc), :],
                                    wsq_ref[pl.ds(k0, kc), :])
                czq = jnp.dot(w_ref[:, pl.ds(k0, kc)].astype(jnp.float32), enc,
                              preferred_element_type=jnp.float32)         # (D, T)
                better = cm < m                                           # (1, T)
                return (jnp.where(better, cm, m),
                        jnp.where(better, loc + k0, idx),
                        jnp.where(better, czq, zq))

            init = (jnp.full((1, T), jnp.inf, dtype=jnp.float32),
                    jnp.zeros((1, T), dtype=jnp.int32),
                    jnp.zeros((D, T), dtype=jnp.float32))
            _, idx, zq = lax.fori_loop(0, n_chunks, body, init)

        zq_ref[0] = zq.astype(zq_ref.dtype)
        idx_ref[0] = idx

    return kernel


def _run_vq_pallas(z3, wneg2t, wsq, w_pad, *, t_hw, kc, n_chunks, vmem_limit,
                   conservative):
    B, D, HWp = z3.shape
    K_pad = wneg2t.shape[0]
    n_hw = HWp // t_hw

    # constant-index codebook blocks: single-buffer them (double-buffering a
    # constant block only wastes VMEM — decisive on v7x's 64 MiB).
    cb_kwargs = {} if conservative else {"pipeline_mode": pl.Buffered(1)}
    kernel = _make_vq_kernel(kc, n_chunks, int_argmin=not conservative)

    return pl.pallas_call(
        kernel,
        out_shape=(
            jax.ShapeDtypeStruct((B, D, HWp), z3.dtype),      # quantized, code-major
            jax.ShapeDtypeStruct((B, 1, HWp), jnp.int32),     # indices, lane-dense
        ),
        grid_spec=pltpu.PrefetchScalarGridSpec(
            num_scalar_prefetch=0,
            grid=(B, n_hw),
            in_specs=[
                pl.BlockSpec((1, D, t_hw), lambda b, t: (b, 0, t)),           # z tile
                pl.BlockSpec((K_pad, D), lambda b, t: (0, 0), **cb_kwargs),   # -2 * W^T
                pl.BlockSpec((K_pad, 1), lambda b, t: (0, 0), **cb_kwargs),   # ||W||^2
                pl.BlockSpec((D, K_pad), lambda b, t: (0, 0), **cb_kwargs),   # W
            ],
            out_specs=[
                pl.BlockSpec((1, D, t_hw), lambda b, t: (b, 0, t)),
                pl.BlockSpec((1, 1, t_hw), lambda b, t: (b, 0, t)),
            ],
        ),
        compiler_params=pltpu.CompilerParams(
            dimension_semantics=("parallel", "parallel"),     # no resident accumulators
            vmem_limit_bytes=vmem_limit,
        ),
    )(z3, wneg2t, wsq, w_pad)


# --------------------------------------------------------------------------- #
# wrapper (forward pass of EMAVectorQuantizerV2, eval mode)
# --------------------------------------------------------------------------- #
def ema_vq_forward(z, weight, beta, *, return_encodings=True):
    """z: [B, C, H, W] (NCHW), weight: [codebook_dim, num_tokens].

    Returns (z_q [B,C,H,W], loss, (perplexity, encodings [N,K] or None,
             encoding_indices [B,H,W])).
    """
    # TODO(synk): training-mode EMA buffer updates (cluster_size / embed_avg /
    # weight renormalization) are stateful in-place ops; only eval forward here.
    B, C, H, W = z.shape
    D, K = weight.shape
    assert C == D, "channel dim must equal codebook_dim"
    HW = H * W

    # ---- codebook prep (hoisted out of the kernel) --------------------------
    kc = min(512, _ceil_to(K, 128))            # in-kernel codebook chunk size
    K_pad = _ceil_to(K, kc)
    n_chunks = K_pad // kc
    pad_k = K_pad - K

    w_f32 = weight.astype(jnp.float32)                                   # (D, K)
    wneg2t = jnp.pad(-2.0 * w_f32.T, ((0, pad_k), (0, 0)))               # (K_pad, D)
    wsq = jnp.pad(jnp.sum(w_f32 * w_f32, axis=0)[:, None],
                  ((0, pad_k), (0, 0)), constant_values=1e30)            # (K_pad, 1)
    w_pad = jnp.pad(w_f32, ((0, 0), (0, pad_k)))                         # (D, K_pad)

    # ---- spatial prep: code-major, lane-dense (pad HW to multiple of 128) ---
    HW_pad = _ceil_to(HW, 128)
    z3 = z.reshape(B, D, HW)                           # free reshape, no transpose
    if HW_pad != HW:
        z3 = jnp.pad(z3, ((0, 0), (0, 0), (0, HW_pad - HW)))

    # ---- generation-aware tiling / VMEM budget -------------------------------
    vmem_cap = _vmem_capacity_bytes()
    vmem_limit = max(32 * 1024 * 1024, int(0.80 * vmem_cap))
    t_hw = _pick_spatial_tile(HW_pad, D, K_pad, kc, z.dtype.itemsize,
                              budget=int(0.75 * vmem_limit))

    run = functools.partial(_run_vq_pallas, z3, wneg2t, wsq, w_pad,
                            t_hw=t_hw, kc=kc, n_chunks=n_chunks,
                            vmem_limit=vmem_limit)
    try:
        zq3, idx3 = run(conservative=False)
    except Exception:
        # Some jax/libtpu builds reject pipeline_mode=Buffered(1) or integer
        # cross-sublane min-reductions; retry the previously validated
        # conservative formulation (numerically identical).
        zq3, idx3 = run(conservative=True)

    if HW_pad != HW:
        zq3 = zq3[:, :, :HW]
        idx3 = idx3[:, :, :HW]

    z_q_raw = zq3.reshape(B, D, H, W).astype(z.dtype)                    # already NCHW
    encoding_indices = idx3.reshape(B, H, W)

    # avg_probs / perplexity via an O(N+K) float32 histogram, not a dense
    # (N, K) one-hot mean (which would re-create the HBM write the kernel avoids).
    idx_flat = idx3.reshape(-1)                                          # (N,), order (b, h, w)
    counts = jnp.zeros((K,), jnp.float32).at[idx_flat].add(1.0)
    avg_probs = counts / jnp.float32(idx_flat.shape[0])
    perplexity = jnp.exp(-jnp.sum(avg_probs * jnp.log(avg_probs + 1e-10)))

    encodings = (jax.nn.one_hot(idx_flat, K, dtype=z.dtype)
                 if return_encodings else None)

    # beta * mean((z_q.detach() - z)^2); mean is layout-invariant, so NCHW is
    # fine, and computing it here keeps d(loss)/d(z) correct (no VJP through
    # pallas_call).
    loss = beta * jnp.mean((lax.stop_gradient(z_q_raw) - z) ** 2)

    # straight-through estimator: z_q = z + (z_q - z).detach()
    z_q = z + lax.stop_gradient(z_q_raw - z)

    return z_q, loss, (perplexity, encodings, encoding_indices)


# --------------------------------------------------------------------------- #
# pure-JAX reference (mirrors the torch module, eval mode) for validation
# --------------------------------------------------------------------------- #
def _reference_forward(z, weight, beta):
    B, C, H, W = z.shape
    D, K = weight.shape
    z_nhwc = jnp.transpose(z, (0, 2, 3, 1)).astype(jnp.float32)
    z_flat = z_nhwc.reshape(-1, D)
    w = weight.astype(jnp.float32)
    d = (jnp.sum(z_flat ** 2, axis=1, keepdims=True)
         - 2.0 * z_flat @ w
         + jnp.sum(w ** 2, axis=0, keepdims=True))
    idx = jnp.argmin(d, axis=1)
    z_q_nhwc = w.T[idx].reshape(B, H, W, D)
    counts = jnp.zeros((K,), jnp.float32).at[idx].add(1.0)
    avg_probs = counts / jnp.float32(idx.shape[0])
    perplexity = jnp.exp(-jnp.sum(avg_probs * jnp.log(avg_probs + 1e-10)))
    loss = beta * jnp.mean((lax.stop_gradient(z_q_nhwc) - z_nhwc) ** 2)
    return loss, perplexity, idx.reshape(B, H, W)


if __name__ == "__main__":
    key = jax.random.PRNGKey(0)
    k_z, k_w = jax.random.split(key)

    # module config (small, deterministic)
    B, C, H, W = 2, 4, 16, 16          # codebook_dim = C = 4
    num_tokens = 128
    beta = 0.25

    z = jax.random.normal(k_z, (B, C, H, W), dtype=jnp.float32)
    # EmbeddingEMA.weight ~ randn(codebook_dim, num_tokens)
    codebook_weight = jax.random.normal(k_w, (C, num_tokens), dtype=jnp.float32)

    z_q, loss, (perplexity, encodings, encoding_indices) = ema_vq_forward(
        z, codebook_weight, beta)
    jax.block_until_ready((z_q, loss, perplexity, encodings, encoding_indices))

    assert z_q.shape == (B, C, H, W)
    assert encodings.shape == (B * H * W, num_tokens)
    assert encoding_indices.shape == (B, H, W)

    # lightweight validation against a pure-JAX reference (tolerant to
    # fp-rounding on exactly tied codes).
    ref_loss, ref_ppl, ref_idx = _reference_forward(z, codebook_weight, beta)
    match = float(jnp.mean((encoding_indices == ref_idx).astype(jnp.float32)))
    assert match > 0.99, f"index match fraction too low: {match}"
    assert abs(float(loss) - float(ref_loss)) <= 1e-3 * max(1.0, abs(float(ref_loss)))
    assert abs(float(perplexity) - float(ref_ppl)) <= 5e-2 * max(1.0, float(ref_ppl))

    print("KERNEL_OK")
</pallas_src>

<mosaic_0001>
module attributes {stable_mosaic.version = 11 : i64} {
  func.func @kernel(%arg0: i32, %arg1: i32, %arg2: memref<1x4x256xf32, #tpu.memory_space<vmem>>, %arg3: memref<128x4xf32, #tpu.memory_space<vmem>>, %arg4: memref<128x1xf32, #tpu.memory_space<vmem>>, %arg5: memref<4x128xf32, #tpu.memory_space<vmem>>, %arg6: memref<1x4x256xf32, #tpu.memory_space<vmem>>, %arg7: memref<1x1x256xi32, #tpu.memory_space<vmem>>) attributes {dimension_semantics = [#tpu.dimension_semantics<parallel>, #tpu.dimension_semantics<parallel>], iteration_bounds = array<i64: 2, 1>, scalar_prefetch = 0 : i64, scratch_operands = 0 : i64, tpu.core_type = #tpu.core_type<tc>, window_params = [{transform_indices = @transform_0, window_bounds = array<i64: 1, 4, 256>}, {pipeline_mode = #tpu.pipeline_mode<synchronous>, transform_indices = @transform_1, window_bounds = array<i64: 128, 4>}, {pipeline_mode = #tpu.pipeline_mode<synchronous>, transform_indices = @transform_2, window_bounds = array<i64: 128, 1>}, {pipeline_mode = #tpu.pipeline_mode<synchronous>, transform_indices = @transform_3, window_bounds = array<i64: 4, 128>}, {transform_indices = @transform_4, window_bounds = array<i64: 1, 4, 256>}, {transform_indices = @transform_5, window_bounds = array<i64: 1, 1, 256>}]} {
    %c0 = arith.constant 0 : index
    %c0_0 = arith.constant 0 : index
    %c0_1 = arith.constant 0 : index
    %0 = vector.load %arg2[%c0, %c0_0, %c0_1] : memref<1x4x256xf32, #tpu.memory_space<vmem>>, vector<1x4x256xf32>
    %1 = vector.shape_cast %0 : vector<1x4x256xf32> to vector<4x256xf32>
    %c0_2 = arith.constant 0 : index
    %c0_3 = arith.constant 0 : index
    %2 = vector.load %arg3[%c0_2, %c0_3] : memref<128x4xf32, #tpu.memory_space<vmem>>, vector<128x4xf32>
    %c0_4 = arith.constant 0 : index
    %c0_5 = arith.constant 0 : index
    %3 = vector.load %arg4[%c0_4, %c0_5] : memref<128x1xf32, #tpu.memory_space<vmem>>, vector<128x1xf32>
    %cst = arith.constant dense<0.000000e+00> : vector<128x256xf32>
    %4 = tpu.matmul %2, %1, %cst {dimension_numbers = #tpu.dot_dimension_numbers<[1], [0], [0], [1], [0, 0, 1, 1], [], []>} : vector<128x4xf32>, vector<4x256xf32>, vector<128x256xf32> -> vector<128x256xf32>
    %5 = vector.broadcast %3 : vector<128x1xf32> to vector<128x256xf32>
    %6 = arith.addf %4, %5 : vector<128x256xf32>
    %cst_6 = arith.constant dense<0x7F800000> : vector<256xf32>
    %7 = vector.multi_reduction <minimumf>, %6, %cst_6 [0] : vector<128x256xf32> to vector<256xf32>
    %8 = vector.shape_cast %7 : vector<256xf32> to vector<1x256xf32>
    %9 = tpu.iota {dimensions = array<i32: 0>} : vector<128x256xi32>
    %10 = vector.broadcast %8 : vector<1x256xf32> to vector<128x256xf32>
    %11 = arith.cmpf oeq, %6, %10 : vector<128x256xf32>
    %c128_i32 = arith.constant 128 : i32
    %12 = vector.broadcast %c128_i32 : i32 to vector<128x256xi32>
    %13 = arith.select %11, %9, %12 : vector<128x256xi1>, vector<128x256xi32>
    %cst_7 = arith.constant dense<2147483647> : vector<256xi32>
    %14 = vector.multi_reduction <minsi>, %13, %cst_7 [0] : vector<128x256xi32> to vector<256xi32>
    %15 = vector.shape_cast %14 : vector<256xi32> to vector<1x256xi32>
    %16 = vector.broadcast %15 : vector<1x256xi32> to vector<128x256xi32>
    %17 = arith.cmpi eq, %9, %16 : vector<128x256xi32>
    %18 = arith.extui %17 : vector<128x256xi1> to vector<128x256xi32>
    %19 = arith.sitofp %18 : vector<128x256xi32> to vector<128x256xf32>
    %c0_8 = arith.constant 0 : index
    %c0_9 = arith.constant 0 : index
    %20 = vector.load %arg5[%c0_8, %c0_9] : memref<4x128xf32, #tpu.memory_space<vmem>>, vector<4x128xf32>
    %cst_10 = arith.constant dense<0.000000e+00> : vector<4x256xf32>
    %21 = tpu.matmul %20, %19, %cst_10 {dimension_numbers = #tpu.dot_dimension_numbers<[1], [0], [0], [1], [0, 0, 1, 1], [], []>} : vector<4x128xf32>, vector<128x256xf32>, vector<4x256xf32> -> vector<4x256xf32>
    %c0_11 = arith.constant 0 : index
    %c0_12 = arith.constant 0 : index
    %c0_13 = arith.constant 0 : index
    %22 = vector.load %arg6[%c0_11, %c0_12, %c0_13] : memref<1x4x256xf32, #tpu.memory_space<vmem>>, vector<1x4x256xf32>
    %23 = vector.shape_cast %22 : vector<1x4x256xf32> to vector<4x256xf32>
    %24 = vector.shape_cast %21 : vector<4x256xf32> to vector<1x4x256xf32>
    tpu.vector_store %arg6[%c0_11, %c0_12, %c0_13], %24 {strides = array<i32>} : memref<1x4x256xf32, #tpu.memory_space<vmem>>, vector<1x4x256xf32>,
    %c0_14 = arith.constant 0 : index
    %c0_15 = arith.constant 0 : index
    %c0_16 = arith.constant 0 : index
    %25 = vector.load %arg7[%c0_14, %c0_15, %c0_16] : memref<1x1x256xi32, #tpu.memory_space<vmem>>, vector<1x1x256xi32>
    %26 = vector.shape_cast %25 : vector<1x1x256xi32> to vector<1x256xi32>
    %27 = vector.shape_cast %15 : vector<1x256xi32> to vector<1x1x256xi32>
    tpu.vector_store %arg7[%c0_14, %c0_15, %c0_16], %27 {strides = array<i32>} : memref<1x1x256xi32, #tpu.memory_space<vmem>>, vector<1x1x256xi32>,
    return
  }
  func.func @transform_0(%arg0: i32, %arg1: i32) -> (i32, i32, i32) {
    %c0_i32 = arith.constant 0 : i32
    %c0_i32_0 = arith.constant 0 : i32
    return %arg0, %c0_i32, %arg1 : i32, i32, i32
  }
  func.func @transform_1(%arg0: i32, %arg1: i32) -> (i32, i32) {
    %c0_i32 = arith.constant 0 : i32
    %c0_i32_0 = arith.constant 0 : i32
    %c0_i32_1 = arith.constant 0 : i32
    return %c0_i32, %c0_i32_0 : i32, i32
  }
  func.func @transform_2(%arg0: i32, %arg1: i32) -> (i32, i32) {
    %c0_i32 = arith.constant 0 : i32
    %c0_i32_0 = arith.constant 0 : i32
    %c0_i32_1 = arith.constant 0 : i32
    return %c0_i32, %c0_i32_0 : i32, i32
  }
  func.func @transform_3(%arg0: i32, %arg1: i32) -> (i32, i32) {
    %c0_i32 = arith.constant 0 : i32
    %c0_i32_0 = arith.constant 0 : i32
    %c0_i32_1 = arith.constant 0 : i32
    return %c0_i32, %c0_i32_0 : i32, i32
  }
  func.func @transform_4(%arg0: i32, %arg1: i32) -> (i32, i32, i32) {
    %c0_i32 = arith.constant 0 : i32
    %c0_i32_0 = arith.constant 0 : i32
    return %arg0, %c0_i32, %arg1 : i32, i32, i32
  }
  func.func @transform_5(%arg0: i32, %arg1: i32) -> (i32, i32, i32) {
    %c0_i32 = arith.constant 0 : i32
    %c0_i32_0 = arith.constant 0 : i32
    return %arg0, %c0_i32, %arg1 : i32, i32, i32
  }
}

module attributes {stable_mosaic.version = 11 : i64} {
  func.func @kernel(%arg0: i32, %arg1: i32, %arg2: memref<1x4x256xf32, #tpu.memory_space<vmem>>, %arg3: memref<128x4xf32, #tpu.memory_space<vmem>>, %arg4: memref<128x1xf32, #tpu.memory_space<vmem>>, %arg5: memref<4x128xf32, #tpu.memory_space<vmem>>, %arg6: memref<1x4x256xf32, #tpu.memory_space<vmem>>, %arg7: memref<1x1x256xi32, #tpu.memory_space<vmem>>) attributes {dimension_semantics = [#tpu.dimension_semantics<parallel>, #tpu.dimension_semantics<parallel>], iteration_bounds = array<i64: 2, 1>, scalar_prefetch = 0 : i64, scratch_operands = 0 : i64, tpu.core_type = #tpu.core_type<tc>, window_params = [{transform_indices = @transform_0, window_bounds = array<i64: 1, 4, 256>}, {pipeline_mode = #tpu.pipeline_mode<synchronous>, transform_indices = @transform_1, window_bounds = array<i64: 128, 4>}, {pipeline_mode = #tpu.pipeline_mode<synchronous>, transform_indices = @transform_2, window_bounds = array<i64: 128, 1>}, {pipeline_mode = #tpu.pipeline_mode<synchronous>, transform_indices = @transform_3, window_bounds = array<i64: 4, 128>}, {transform_indices = @transform_4, window_bounds = array<i64: 1, 4, 256>}, {transform_indices = @transform_5, window_bounds = array<i64: 1, 1, 256>}]} {
    %c0 = arith.constant 0 : index
    %c0_0 = arith.constant 0 : index
    %c0_1 = arith.constant 0 : index
    %0 = vector.load %arg2[%c0, %c0_0, %c0_1] : memref<1x4x256xf32, #tpu.memory_space<vmem>>, vector<1x4x256xf32>
    %1 = vector.shape_cast %0 : vector<1x4x256xf32> to vector<4x256xf32>
    %c0_2 = arith.constant 0 : index
    %c0_3 = arith.constant 0 : index
    %2 = vector.load %arg3[%c0_2, %c0_3] : memref<128x4xf32, #tpu.memory_space<vmem>>, vector<128x4xf32>
    %c0_4 = arith.constant 0 : index
    %c0_5 = arith.constant 0 : index
    %3 = vector.load %arg4[%c0_4, %c0_5] : memref<128x1xf32, #tpu.memory_space<vmem>>, vector<128x1xf32>
    %cst = arith.constant dense<0.000000e+00> : vector<128x256xf32>
    %4 = tpu.matmul %2, %1, %cst {dimension_numbers = #tpu.dot_dimension_numbers<[1], [0], [0], [1], [0, 0, 1, 1], [], []>} : vector<128x4xf32>, vector<4x256xf32>, vector<128x256xf32> -> vector<128x256xf32>
    %5 = vector.broadcast %3 : vector<128x1xf32> to vector<128x256xf32>
    %6 = arith.addf %4, %5 : vector<128x256xf32>
    %cst_6 = arith.constant dense<0x7F800000> : vector<256xf32>
    %7 = vector.multi_reduction <minimumf>, %6, %cst_6 [0] : vector<128x256xf32> to vector<256xf32>
    %8 = vector.shape_cast %7 : vector<256xf32> to vector<1x256xf32>
    %9 = tpu.iota {dimensions = array<i32: 0>} : vector<128x256xi32>
    %10 = arith.sitofp %9 : vector<128x256xi32> to vector<128x256xf32>
    %11 = vector.broadcast %8 : vector<1x256xf32> to vector<128x256xf32>
    %12 = arith.cmpf oeq, %6, %11 : vector<128x256xf32>
    %cst_7 = arith.constant 1.280000e+02 : f32
    %13 = vector.broadcast %cst_7 : f32 to vector<128x256xf32>
    %14 = arith.select %12, %10, %13 : vector<128x256xi1>, vector<128x256xf32>
    %cst_8 = arith.constant dense<0x7F800000> : vector<256xf32>
    %15 = vector.multi_reduction <minimumf>, %14, %cst_8 [0] : vector<128x256xf32> to vector<256xf32>
    %16 = vector.shape_cast %15 : vector<256xf32> to vector<1x256xf32>
    %17 = arith.fptosi %16 : vector<1x256xf32> to vector<1x256xi32>
    %18 = vector.broadcast %17 : vector<1x256xi32> to vector<128x256xi32>
    %19 = arith.cmpi eq, %9, %18 : vector<128x256xi32>
    %20 = arith.extui %19 : vector<128x256xi1> to vector<128x256xi32>
    %21 = arith.sitofp %20 : vector<128x256xi32> to vector<128x256xf32>
    %c0_9 = arith.constant 0 : index
    %c0_10 = arith.constant 0 : index
    %22 = vector.load %arg5[%c0_9, %c0_10] : memref<4x128xf32, #tpu.memory_space<vmem>>, vector<4x128xf32>
    %cst_11 = arith.constant dense<0.000000e+00> : vector<4x256xf32>
    %23 = tpu.matmul %22, %21, %cst_11 {dimension_numbers = #tpu.dot_dimension_numbers<[1], [0], [0], [1], [0, 0, 1, 1], [], []>} : vector<4x128xf32>, vector<128x256xf32>, vector<4x256xf32> -> vector<4x256xf32>
    %c0_12 = arith.constant 0 : index
    %c0_13 = arith.constant 0 : index
    %c0_14 = arith.constant 0 : index
    %24 = vector.load %arg6[%c0_12, %c0_13, %c0_14] : memref<1x4x256xf32, #tpu.memory_space<vmem>>, vector<1x4x256xf32>
    %25 = vector.shape_cast %24 : vector<1x4x256xf32> to vector<4x256xf32>
    %26 = vector.shape_cast %23 : vector<4x256xf32> to vector<1x4x256xf32>
    tpu.vector_store %arg6[%c0_12, %c0_13, %c0_14], %26 {strides = array<i32>} : memref<1x4x256xf32, #tpu.memory_space<vmem>>, vector<1x4x256xf32>,
    %c0_15 = arith.constant 0 : index
    %c0_16 = arith.constant 0 : index
    %c0_17 = arith.constant 0 : index
    %27 = vector.load %arg7[%c0_15, %c0_16, %c0_17] : memref<1x1x256xi32, #tpu.memory_space<vmem>>, vector<1x1x256xi32>
    %28 = vector.shape_cast %27 : vector<1x1x256xi32> to vector<1x256xi32>
    %29 = vector.shape_cast %17 : vector<1x256xi32> to vector<1x1x256xi32>
    tpu.vector_store %arg7[%c0_15, %c0_16, %c0_17], %29 {strides = array<i32>} : memref<1x1x256xi32, #tpu.memory_space<vmem>>, vector<1x1x256xi32>,
    return
  }
  func.func @transform_0(%arg0: i32, %arg1: i32) -> (i32, i32, i32) {
    %c0_i32 = arith.constant 0 : i32
    %c0_i32_0 = arith.constant 0 : i32
    return %arg0, %c0_i32, %arg1 : i32, i32, i32
  }
  func.func @transform_1(%arg0: i32, %arg1: i32) -> (i32, i32) {
    %c0_i32 = arith.constant 0 : i32
    %c0_i32_0 = arith.constant 0 : i32
    %c0_i32_1 = arith.constant 0 : i32
    return %c0_i32, %c0_i32_0 : i32, i32
  }
  func.func @transform_2(%arg0: i32, %arg1: i32) -> (i32, i32) {
    %c0_i32 = arith.constant 0 : i32
    %c0_i32_0 = arith.constant 0 : i32
    %c0_i32_1 = arith.constant 0 : i32
    return %c0_i32, %c0_i32_0 : i32, i32
  }
  func.func @transform_3(%arg0: i32, %arg1: i32) -> (i32, i32) {
    %c0_i32 = arith.constant 0 : i32
    %c0_i32_0 = arith.constant 0 : i32
    %c0_i32_1 = arith.constant 0 : i32
    return %c0_i32, %c0_i32_0 : i32, i32
  }
  func.func @transform_4(%arg0: i32, %arg1: i32) -> (i32, i32, i32) {
    %c0_i32 = arith.constant 0 : i32
    %c0_i32_0 = arith.constant 0 : i32
    return %arg0, %c0_i32, %arg1 : i32, i32, i32
  }
  func.func @transform_5(%arg0: i32, %arg1: i32) -> (i32, i32, i32) {
    %c0_i32 = arith.constant 0 : i32
    %c0_i32_0 = arith.constant 0 : i32
    return %arg0, %c0_i32, %arg1 : i32, i32, i32
  }
}

</mosaic_0001>

<llo_original>
// kernel: tpu_custom_call.1
$region0: #{tpu_custom_call.1}
  #allocation0 [shape = 'u32[]', space=smem, size = 0x4, offset = 0x4, fixed_abs, tag = 'smem constant byte address 0x4 - core index']
  #allocation1 [shape = 'u32[72,128]{1,0:T(1,128)}', space=vmem, size = 0x9000, scoped, tag = 'internal scratch']
  %s0 = inlined_call_operand.vmem [shape: f32[2,4,256], index: 0, kind: input, shape index: {}]
  %s1 = inlined_call_operand.vmem [shape: f32[128,4], index: 1, kind: input, shape index: {}]
  %s2 = inlined_call_operand.vmem [shape: f32[128,1], index: 2, kind: input, shape index: {}]
  %s3 = inlined_call_operand.vmem [shape: f32[4,128], index: 3, kind: input, shape index: {}]
  %s4 = inlined_call_operand.hbm [shape: f32[2,4,256], index: 4, kind: output, shape index: {0}]
  %s5 = inlined_call_operand.hbm [shape: s32[2,1,256], index: 5, kind: output, shape index: {1}]
  %6 = xla_tuple %s4, %s5
  %s7 = sld [smem:[#allocation0]]
  $region57: #{tpu_custom_call.1} parent=0
    _
  %s9 = ssub.s32 1, %s7
  %s10 = scalar_select 0, %s9, %s7
  $region1: #{tpu_custom_call.1} parent=0
    #allocation2 [shape = 'u8[8192]{0}', space=vmem, size = 0x2000, scoped, tag = 'output window, operand 0']
    #allocation3 [shape = 's32[2]{0}', space=sflag, size = 0x8, scoped, tag = 'scoped memory for tpu_custom_call.1']
    #allocation4 [shape = 'u8[2048]{0}', space=vmem, size = 0x800, scoped, tag = 'output window, operand 1']
    #allocation5 [shape = 's32[2]{0}', space=sflag, size = 0x8, scoped, tag = 'scoped memory for tpu_custom_call.1']
    %11 = vsyncpa [#allocation3], 0
    %s12 = scalar_lea.sflag [#allocation3], 1
    %13 = vsyncpa %s12, 0
    %14 = vsyncpa [#allocation5], 0
    %s15 = scalar_lea.sflag [#allocation5], 1
    %16 = vsyncpa %s15, 0
    loop: start=0, step=1, limit=4
    $region2: #{tpu_custom_call.1} parent=1 // loop_pre_header
      _
    $region3: #{tpu_custom_call.1} parent=1 // loop_header
      %s18 = sphi 0, %s22
      %p19 = scmp.ge.s32.totalorder %s18, 4
      %s25 = sphi 0, %s37
      %s26 = sphi 0, %s33
      %s27 = sphi 0, %s25
      %s28 = sphi 0, %s26
      %s29 = sphi 0, %s27
      %s30 = sphi 0, %s28
      %s42 = sphi 0, %s44
      %s45 = sphi 0, %s42
      %s46 = sphi 0, %s45
      %s62 = sphi 0, %s46
      %s66 = sphi 0, %s66
      %s68 = sphi 0, %s66
      %s69 = sphi 0, %s68
      %s83 = sphi 0, %s69
      %s87 = sphi 0, %s87
      %s89 = sphi 0, %s87
      %s90 = sphi 0, %s89
      %s104 = sphi 0, %s90
      %s108 = sphi 0, %s108
      %s110 = sphi 0, %s108
      %s111 = sphi 0, %s110
      %s125 = sphi 0, %s111
      %s133 = sphi 0, %s135
      %s136 = sphi 0, %s133
      %s137 = sphi 0, %s136
      %s153 = sphi 0, %s137
      %s161 = sphi 0, %s163
      %s164 = sphi 0, %s161
      %s165 = sphi 0, %s164
      %s181 = sphi 0, %s165
    $region4: #{tpu_custom_call.1} parent=1 // loop_header_branch
      %21 = sbr.rel (%p19) target = $region8
    $region5: #{tpu_custom_call.1} parent=1 // loop_body
      %s23 = ssub.s32 %s18, 1
      %s24 = ssub.s32 %s18, 2
      %s31 = sadd.s32 1, %s26
      %p32 = scmp.ge.s32.totalorder %s31, 1
      %s33 = scalar_select %p32, 0, %s31
      %s34 = sadd.s32 1, %s25
      %s35 = scalar_select %p32, %s34, %s25
      %p36 = scmp.ge.s32.totalorder %s35, 2
      %s37 = scalar_select %p36, 0, %s35
      %s38 = ssub.s32 %s25, %s37
      %s39 = ssub.s32 %s26, %s33
      %s40 = sor.u32 %s38, %s39
      %p41 = scmp.eq.s32.totalorder %s40, 0
      %s43 = sadd.s32 %s42, 1
      %s44 = scalar_select %p41, %s42, %s43
      %p47 = pneg %p41
      %p48 = scmp.eq.s32.totalorder %s18, 1
      %p49 = por %p47, %p48
      %p50 = scmp.ne.s32.totalorder %s42, %s45
      %p51 = scmp.eq.s32.totalorder %s18, 0
      %p52 = por %p50, %p51
      %p53 = scmp.ne.s32.totalorder %s42, %s45
      %p54 = scmp.eq.s32.totalorder %s23, 1
      %p55 = por %p53, %p54
      %p56 = scmp.ne.s32.totalorder %s45, %s46
      %p57 = scmp.eq.s32.totalorder %s23, 0
      %p58 = por %p56, %p57
      %p59 = scmp.ne.s32.totalorder %s45, %s46
      %p60 = scmp.eq.s32.totalorder %s24, 1
      %p61 = por %p59, %p60
      %p63 = scmp.ne.s32.totalorder %s46, %s62
      %p64 = scmp.eq.s32.totalorder %s24, 0
      %p65 = por %p63, %p64
      %s67 = sadd.s32 %s66, 1
      %p70 = scmp.eq.s32.totalorder %s18, 1
      %p71 = scmp.ne.s32.totalorder %s66, %s68
      %p72 = scmp.eq.s32.totalorder %s18, 0
      %p73 = por %p71, %p72
      %p74 = scmp.ne.s32.totalorder %s66, %s68
      %p75 = scmp.eq.s32.totalorder %s23, 1
      %p76 = por %p74, %p75
      %p77 = scmp.ne.s32.totalorder %s68, %s69
      %p78 = scmp.eq.s32.totalorder %s23, 0
      %p79 = por %p77, %p78
      %p80 = scmp.ne.s32.totalorder %s68, %s69
      %p81 = scmp.eq.s32.totalorder %s24, 1
      %p82 = por %p80, %p81
      %p84 = scmp.ne.s32.totalorder %s69, %s83
      %p85 = scmp.eq.s32.totalorder %s24, 0
      %p86 = por %p84, %p85
      %s88 = sadd.s32 %s87, 1
      %p91 = scmp.eq.s32.totalorder %s18, 1
      %p92 = scmp.ne.s32.totalorder %s87, %s89
      %p93 = scmp.eq.s32.totalorder %s18, 0
      %p94 = por %p92, %p93
      %p95 = scmp.ne.s32.totalorder %s87, %s89
      %p96 = scmp.eq.s32.totalorder %s23, 1
      %p97 = por %p95, %p96
      %p98 = scmp.ne.s32.totalorder %s89, %s90
      %p99 = scmp.eq.s32.totalorder %s23, 0
      %p100 = por %p98, %p99
      %p101 = scmp.ne.s32.totalorder %s89, %s90
      %p102 = scmp.eq.s32.totalorder %s24, 1
      %p103 = por %p101, %p102
      %p105 = scmp.ne.s32.totalorder %s90, %s104
      %p106 = scmp.eq.s32.totalorder %s24, 0
      %p107 = por %p105, %p106
      %s109 = sadd.s32 %s108, 1
      %p112 = scmp.eq.s32.totalorder %s18, 1
      %p113 = scmp.ne.s32.totalorder %s108, %s110
      %p114 = scmp.eq.s32.totalorder %s18, 0
      %p115 = por %p113, %p114
      %p116 = scmp.ne.s32.totalorder %s108, %s110
      %p117 = scmp.eq.s32.totalorder %s23, 1
      %p118 = por %p116, %p117
      %p119 = scmp.ne.s32.totalorder %s110, %s111
      %p120 = scmp.eq.s32.totalorder %s23, 0
      %p121 = por %p119, %p120
      %p122 = scmp.ne.s32.totalorder %s110, %s111
      %p123 = scmp.eq.s32.totalorder %s24, 1
      %p124 = por %p122, %p123
      %p126 = scmp.ne.s32.totalorder %s111, %s125
      %p127 = scmp.eq.s32.totalorder %s24, 0
      %p128 = por %p126, %p127
      %s129 = ssub.s32 %s25, %s37
      %s130 = ssub.s32 %s26, %s33
      %s131 = sor.u32 %s129, %s130
      %p132 = scmp.eq.s32.totalorder %s131, 0
      %s134 = sadd.s32 %s133, 1
      %s135 = scalar_select %p132, %s133, %s134
      %p138 = pneg %p132
      %p139 = scmp.eq.s32.totalorder %s18, 1
      %p140 = por %p138, %p139
      %p141 = scmp.ne.s32.totalorder %s133, %s136
      %p142 = scmp.eq.s32.totalorder %s18, 0
      %p143 = por %p141, %p142
      %p144 = scmp.ne.s32.totalorder %s133, %s136
      %p145 = scmp.eq.s32.totalorder %s23, 1
      %p146 = por %p144, %p145
      %p147 = scmp.ne.s32.totalorder %s136, %s137
      %p148 = scmp.eq.s32.totalorder %s23, 0
      %p149 = por %p147, %p148
      %p150 = scmp.ne.s32.totalorder %s136, %s137
      %p151 = scmp.eq.s32.totalorder %s24, 1
      %p152 = por %p150, %p151
      %p154 = scmp.ne.s32.totalorder %s137, %s153
      %p155 = scmp.eq.s32.totalorder %s24, 0
      %p156 = por %p154, %p155
      %s157 = ssub.s32 %s25, %s37
      %s158 = ssub.s32 %s26, %s33
      %s159 = sor.u32 %s157, %s158
      %p160 = scmp.eq.s32.totalorder %s159, 0
      %s162 = sadd.s32 %s161, 1
      %s163 = scalar_select %p160, %s161, %s162
      %p166 = pneg %p160
      %p167 = scmp.eq.s32.totalorder %s18, 1
      %p168 = por %p166, %p167
      %p169 = scmp.ne.s32.totalorder %s161, %s164
      %p170 = scmp.eq.s32.totalorder %s18, 0
      %p171 = por %p169, %p170
      %p172 = scmp.ne.s32.totalorder %s161, %s164
      %p173 = scmp.eq.s32.totalorder %s23, 1
      %p174 = por %p172, %p173
      %p175 = scmp.ne.s32.totalorder %s164, %s165
      %p176 = scmp.eq.s32.totalorder %s23, 0
      %p177 = por %p175, %p176
      %p178 = scmp.ne.s32.totalorder %s164, %s165
      %p179 = scmp.eq.s32.totalorder %s24, 1
      %p180 = por %p178, %p179
      %p182 = scmp.ne.s32.totalorder %s165, %s181
      %p183 = scmp.eq.s32.totalorder %s24, 0
      %p184 = por %p182, %p183
      %p185 = scmp.le.s32.totalorder 1, %s18
      %p186 = scmp.lt.s32.totalorder %s18, 3
      %p187 = pnand %p185, %p186
      %p188 = pneg %p187
      // Predicated region
      $region9: #{tpu_custom_call.1} parent=5 // pred_check
        _
      $region10: #{tpu_custom_call.1} parent=5 // pred_check_branch
        %190 = sbr.rel (%p187) target = $region12
      $region11: #{tpu_custom_call.1} parent=5 // pred_region
        %s191 = ssub.s32 %s18, 1
        // Predicated region
        $region13: #{tpu_custom_call.1} parent=11 // pred_check
          %p192 = pneg %p79
        $region14: #{tpu_custom_call.1} parent=11 // pred_check_branch
          %194 = sbr.rel (%p192) target = $region16
        $region15: #{tpu_custom_call.1} parent=11 // pred_region
          _
        $region16: #{tpu_custom_call.1} parent=11 // pred_fallthru
          _
        // Predicated region
        $region17: #{tpu_custom_call.1} parent=11 // pred_check
          %p195 = pneg %p100
        $region18: #{tpu_custom_call.1} parent=11 // pred_check_branch
          %197 = sbr.rel (%p195) target = $region20
        $region19: #{tpu_custom_call.1} parent=11 // pred_region
          _
        $region20: #{tpu_custom_call.1} parent=11 // pred_fallthru
          _
        // Predicated region
        $region21: #{tpu_custom_call.1} parent=11 // pred_check
          %p198 = pneg %p121
        $region22: #{tpu_custom_call.1} parent=11 // pred_check_branch
          %200 = sbr.rel (%p198) target = $region24
        $region23: #{tpu_custom_call.1} parent=11 // pred_region
          _
        $region24: #{tpu_custom_call.1} parent=11 // pred_fallthru
          _
      $region12: #{tpu_custom_call.1} parent=5 // pred_fallthru
        _
      %p201 = scmp.lt.s32.totalorder %s18, 2
      // Predicated region
      $region25: #{tpu_custom_call.1} parent=5 // pred_check
        %p202 = pneg %p201
      $region26: #{tpu_custom_call.1} parent=5 // pred_check_branch
        %204 = sbr.rel (%p202) target = $region28
      $region27: #{tpu_custom_call.1} parent=5 // pred_region
        // Predicated region
        $region29: #{tpu_custom_call.1} parent=27 // pred_check
          %p205 = pneg %p52
        $region30: #{tpu_custom_call.1} parent=27 // pred_check_branch
          %207 = sbr.rel (%p205) target = $region32
        $region31: #{tpu_custom_call.1} parent=27 // pred_region
          %s208 = smul.u32 2, %s26
          %p209 = scmp.lt.s32.totalorder %s25, 1
          %s210 = scalar_select %p209, %s25, 1
          %p211 = scmp.lt.s32.totalorder %s208, 1
          %s212 = scalar_select %p211, %s208, 1
          %s213 = smul.addr %s210, 2
          %s214 = sadd.s32 %s212, %s213
          %s215 = smul.addr %s214, 4
          %s216 = scalar_lea.vmem %s0, %s215
          %s217 = smul.u32 2, %s26
        $region32: #{tpu_custom_call.1} parent=27 // pred_fallthru
          _
      $region28: #{tpu_custom_call.1} parent=5 // pred_fallthru
        _
      %p218 = scmp.le.s32.totalorder 1, %s18
      %p219 = scmp.lt.s32.totalorder %s18, 3
      %p220 = pnand %p218, %p219
      %p221 = pneg %p220
      // Predicated region
      $region33: #{tpu_custom_call.1} parent=5 // pred_check
        _
      $region34: #{tpu_custom_call.1} parent=5 // pred_check_branch
        %223 = sbr.rel (%p220) target = $region36
      $region35: #{tpu_custom_call.1} parent=5 // pred_region
        %s224 = ssub.s32 %s18, 1
        %s225 = smul.u32 2, %s28
        %p226 = scmp.lt.s32.totalorder %s27, 1
        %s227 = scalar_select %p226, %s27, 1
        %p228 = scmp.lt.s32.totalorder %s225, 1
        %s229 = scalar_select %p228, %s225, 1
        %s230 = smul.addr %s227, 2
        %s231 = sadd.s32 %s229, %s230
        %s232 = smul.addr %s231, 4
        %s233 = scalar_lea.vmem %s0, %s232
        %p234 = pneg %p58
        %p235 = pneg %p55
        %p236 = pneg %p79
        %p237 = pneg %p76
        %p238 = pneg %p100
        %p239 = pneg %p97
        %p240 = pneg %p121
        %p241 = pneg %p118
        %p242 = pneg %p149
        %p243 = pneg %p146
        %s244 = sand.u32 %s136, 1
        %s245 = scalar_lea.sflag [#allocation3], %s244
        %s246 = sand.u32 %s136, 1
        %s247 = smul.addr %s246, 8
        %s248 = scalar_lea.vmem [#allocation2], %s247
        %p249 = pneg %p177
        %p250 = pneg %p174
        %s251 = sand.u32 %s164, 1
        %s252 = scalar_lea.sflag [#allocation5], %s251
        %s253 = sand.u32 %s164, 1
        %s254 = smul.addr %s253, 2
        %s255 = scalar_lea.vmem [#allocation4], %s254
        %s256 = smul.u32 2, %s28
        %p257 = scmp.lt.s32.totalorder %s27, 1
        %s258 = scalar_select %p257, %s27, 1
        %p259 = scmp.lt.s32.totalorder %s256, 1
        %s260 = scalar_select %p259, %s256, 1
        %s261 = smul.addr %s258, 2
        %s262 = sadd.s32 %s260, %s261
        %s263 = smul.addr %s262, 4
        %s264 = scalar_lea.vmem %s0, %s263
        %s265 = smul.u32 2, %s28
        %s266 = smul.u32 2, %s28
        %s267 = smul.u32 2, %s28
        %v268 = vld [vmem:[%s264] sm:$0xff]
        %v269 = vld [vmem:[%s1] sm:$0xff]
        %v270 = vld [vmem:[%s1 + $0x8] sm:$0xff]
        %v271 = vld [vmem:[%s1 + $0x10] sm:$0xff]
        %v272 = vld [vmem:[%s1 + $0x18] sm:$0xff]
        %v273 = vld [vmem:[%s1 + $0x20] sm:$0xff]
        %v274 = vld [vmem:[%s1 + $0x28] sm:$0xff]
        %v275 = vld [vmem:[%s1 + $0x30] sm:$0xff]
        %v276 = vld [vmem:[%s1 + $0x38] sm:$0xff]
        %v277 = vld [vmem:[%s1 + $0x40] sm:$0xff]
        %v278 = vld [vmem:[%s1 + $0x48] sm:$0xff]
        %v279 = vld [vmem:[%s1 + $0x50] sm:$0xff]
        %v280 = vld [vmem:[%s1 + $0x58] sm:$0xff]
        %v281 = vld [vmem:[%s1 + $0x60] sm:$0xff]
        %v282 = vld [vmem:[%s1 + $0x68] sm:$0xff]
        %v283 = vld [vmem:[%s1 + $0x70] sm:$0xff]
        %v284 = vld [vmem:[%s1 + $0x78] sm:$0xff]
        %v285 = vld [vmem:[%s2] sm:$0xff]
        %v286 = vld [vmem:[%s2 + $0x8] sm:$0xff]
        %v287 = vld [vmem:[%s2 + $0x10] sm:$0xff]
        %v288 = vld [vmem:[%s2 + $0x18] sm:$0xff]
        %v289 = vld [vmem:[%s2 + $0x20] sm:$0xff]
        %v290 = vld [vmem:[%s2 + $0x28] sm:$0xff]
        %v291 = vld [vmem:[%s2 + $0x30] sm:$0xff]
        %v292 = vld [vmem:[%s2 + $0x38] sm:$0xff]
        %v293 = vld [vmem:[%s2 + $0x40] sm:$0xff]
        %v294 = vld [vmem:[%s2 + $0x48] sm:$0xff]
        %v295 = vld [vmem:[%s2 + $0x50] sm:$0xff]
        %v296 = vld [vmem:[%s2 + $0x58] sm:$0xff]
        %v297 = vld [vmem:[%s2 + $0x60] sm:$0xff]
        %v298 = vld [vmem:[%s2 + $0x68] sm:$0xff]
        %v299 = vld [vmem:[%s2 + $0x70] sm:$0xff]
        %v300 = vld [vmem:[%s2 + $0x78] sm:$0xff]
        %302 = vset.pattern.permute.xlu0 0
        %303 = vperm.xlu0 %302, %v285
        %v304 = vpop.permute.xlu0 %303
        %307 = vset.pattern.permute.xlu0 0
        %308 = vperm.xlu0 %307, %v286
        %v309 = vpop.permute.xlu0 %308
        %312 = vset.pattern.permute.xlu0 0
        %313 = vperm.xlu0 %312, %v287
        %v314 = vpop.permute.xlu0 %313
        %317 = vset.pattern.permute.xlu0 0
        %318 = vperm.xlu0 %317, %v288
        %v319 = vpop.permute.xlu0 %318
        %322 = vset.pattern.permute.xlu0 0
        %323 = vperm.xlu0 %322, %v289
        %v324 = vpop.permute.xlu0 %323
        %327 = vset.pattern.permute.xlu0 0
        %328 = vperm.xlu0 %327, %v290
        %v329 = vpop.permute.xlu0 %328
        %332 = vset.pattern.permute.xlu0 0
        %333 = vperm.xlu0 %332, %v291
        %v334 = vpop.permute.xlu0 %333
        %337 = vset.pattern.permute.xlu0 0
        %338 = vperm.xlu0 %337, %v292
        %v339 = vpop.permute.xlu0 %338
        %342 = vset.pattern.permute.xlu0 0
        %343 = vperm.xlu0 %342, %v293
        %v344 = vpop.permute.xlu0 %343
        %347 = vset.pattern.permute.xlu0 0
        %348 = vperm.xlu0 %347, %v294
        %v349 = vpop.permute.xlu0 %348
        %352 = vset.pattern.permute.xlu0 0
        %353 = vperm.xlu0 %352, %v295
        %v354 = vpop.permute.xlu0 %353
        %357 = vset.pattern.permute.xlu0 0
        %358 = vperm.xlu0 %357, %v296
        %v359 = vpop.permute.xlu0 %358
        %362 = vset.pattern.permute.xlu0 0
        %363 = vperm.xlu0 %362, %v297
        %v364 = vpop.permute.xlu0 %363
        %367 = vset.pattern.permute.xlu0 0
        %368 = vperm.xlu0 %367, %v298
        %v369 = vpop.permute.xlu0 %368
        %372 = vset.pattern.permute.xlu0 0
        %373 = vperm.xlu0 %372, %v299
        %v374 = vpop.permute.xlu0 %373
        %377 = vset.pattern.permute.xlu0 0
        %378 = vperm.xlu0 %377, %v300
        %v379 = vpop.permute.xlu0 %378
        %382 = vst [vmem:[#allocation1] ss:$2 sm:$0xff] %v268
        %v383 = vld.sshfl [vmem:[#allocation1] sm:$0xff pattern:$0x75316420]
        %v384 = vld.sshfl [vmem:[#allocation1 + $0x8] sm:$0xff pattern:$0x75316420]
        %vm385 = vcmask 31744
        %v387 = vsel %vm385, %v269, 0
        %v390 = vsel %vm385, %v270, 0
        %v393 = vsel %vm385, %v271, 0
        %v396 = vsel %vm385, %v272, 0
        %v399 = vsel %vm385, %v273, 0
        %v402 = vsel %vm385, %v274, 0
        %v405 = vsel %vm385, %v275, 0
        %v408 = vsel %vm385, %v276, 0
        %v411 = vsel %vm385, %v277, 0
        %v414 = vsel %vm385, %v278, 0
        %v417 = vsel %vm385, %v279, 0
        %v420 = vsel %vm385, %v280, 0
        %v423 = vsel %vm385, %v281, 0
        %v426 = vsel %vm385, %v282, 0
        %v429 = vsel %vm385, %v283, 0
        %v432 = vsel %vm385, %v284, 0
        %vm434 = vcmask 1043456
        %v435 = vsel %vm434, %v383, 0
        %v437 = vsel %vm434, %v384, 0
        %439 = vmatpush.msra.mxu0 0.0
        %440 = vmatpush.msra.mxu0 0.0
        %441 = vmatpush.msra.mxu0 0.0
        %442 = vmatpush.msra.mxu0 0.0
        %443 = vmatpush.msra.mxu0 0.0
        %444 = vmatpush.msra.mxu0 0.0
        %445 = vmatpush.msra.mxu0 0.0
        %446 = vmatpush.msra.mxu0 0.0
        %447 = vmatpush.msra.mxu0 0.0
        %448 = vmatpush.msra.mxu0 0.0
        %449 = vmatpush.msra.mxu0 0.0
        %450 = vmatpush.msra.mxu0 0.0
        %451 = vmatpush.msra.mxu0 0.0
        %452 = vmatpush.msra.mxu0 0.0
        %453 = vmatpush.msra.mxu0 0.0
        %454 = vmatpush.msra.mxu0 %v435
        %455 = vmatmul.f32.gmra.mxu0 %v387
        %v456 = vpop.f32.mrf.mxu0
        %v457 = vadd.f32 %v304, %v456
        %458 = vmatmul.f32.gmra.mxu0 %v390
        %v459 = vpop.f32.mrf.mxu0
        %v460 = vadd.f32 %v309, %v459
        %461 = vmatmul.f32.gmra.mxu0 %v393
        %v462 = vpop.f32.mrf.mxu0
        %v463 = vadd.f32 %v314, %v462
        %464 = vmatmul.f32.gmra.mxu0 %v396
        %v465 = vpop.f32.mrf.mxu0
        %v466 = vadd.f32 %v319, %v465
        %467 = vmatmul.f32.gmra.mxu0 %v399
        %v468 = vpop.f32.mrf.mxu0
        %v469 = vadd.f32 %v324, %v468
        %470 = vmatmul.f32.gmra.mxu0 %v402
        %v471 = vpop.f32.mrf.mxu0
        %v472 = vadd.f32 %v329, %v471
        %473 = vmatmul.f32.gmra.mxu0 %v405
        %v474 = vpop.f32.mrf.mxu0
        %v475 = vadd.f32 %v334, %v474
        %476 = vmatmul.f32.gmra.mxu0 %v408
        %v477 = vpop.f32.mrf.mxu0
        %v478 = vadd.f32 %v339, %v477
        %479 = vmatmul.f32.gmra.mxu0 %v411
        %v480 = vpop.f32.mrf.mxu0
        %v481 = vadd.f32 %v344, %v480
        %482 = vmatmul.f32.gmra.mxu0 %v414
        %v483 = vpop.f32.mrf.mxu0
        %v484 = vadd.f32 %v349, %v483
        %485 = vmatmul.f32.gmra.mxu0 %v417
        %v486 = vpop.f32.mrf.mxu0
        %v487 = vadd.f32 %v354, %v486
        %488 = vmatmul.f32.gmra.mxu0 %v420
        %v489 = vpop.f32.mrf.mxu0
        %v490 = vadd.f32 %v359, %v489
        %491 = vmatmul.f32.gmra.mxu0 %v423
        %v492 = vpop.f32.mrf.mxu0
        %v493 = vadd.f32 %v364, %v492
        %494 = vmatmul.f32.gmra.mxu0 %v426
        %v495 = vpop.f32.mrf.mxu0
        %v496 = vadd.f32 %v369, %v495
        %497 = vmatmul.f32.gmra.mxu0 %v429
        %v498 = vpop.f32.mrf.mxu0
        %v499 = vadd.f32 %v374, %v498
        %500 = vmatmul.f32.gmra.mxu0 %v432
        %v501 = vpop.f32.mrf.mxu0
        %v502 = vadd.f32 %v379, %v501
        %503 = vdwg.mxu0
        %504 = vmatpush.msra.mxu0 0.0
        %505 = vmatpush.msra.mxu0 0.0
        %506 = vmatpush.msra.mxu0 0.0
        %507 = vmatpush.msra.mxu0 0.0
        %508 = vmatpush.msra.mxu0 0.0
        %509 = vmatpush.msra.mxu0 0.0
        %510 = vmatpush.msra.mxu0 0.0
        %511 = vmatpush.msra.mxu0 0.0
        %512 = vmatpush.msra.mxu0 0.0
        %513 = vmatpush.msra.mxu0 0.0
        %514 = vmatpush.msra.mxu0 0.0
        %515 = vmatpush.msra.mxu0 0.0
        %516 = vmatpush.msra.mxu0 0.0
        %517 = vmatpush.msra.mxu0 0.0
        %518 = vmatpush.msra.mxu0 0.0
        %519 = vmatpush.msra.mxu0 %v437
        %520 = vmatmul.f32.gmra.mxu0 %v387
        %v521 = vpop.f32.mrf.mxu0
        %v522 = vadd.f32 %v304, %v521
        %523 = vmatmul.f32.gmra.mxu0 %v390
        %v524 = vpop.f32.mrf.mxu0
        %v525 = vadd.f32 %v309, %v524
        %526 = vmatmul.f32.gmra.mxu0 %v393
        %v527 = vpop.f32.mrf.mxu0
        %v528 = vadd.f32 %v314, %v527
        %529 = vmatmul.f32.gmra.mxu0 %v396
        %v530 = vpop.f32.mrf.mxu0
        %v531 = vadd.f32 %v319, %v530
        %532 = vmatmul.f32.gmra.mxu0 %v399
        %v533 = vpop.f32.mrf.mxu0
        %v534 = vadd.f32 %v324, %v533
        %535 = vmatmul.f32.gmra.mxu0 %v402
        %v536 = vpop.f32.mrf.mxu0
        %v537 = vadd.f32 %v329, %v536
        %538 = vmatmul.f32.gmra.mxu0 %v405
        %v539 = vpop.f32.mrf.mxu0
        %v540 = vadd.f32 %v334, %v539
        %541 = vmatmul.f32.gmra.mxu0 %v408
        %v542 = vpop.f32.mrf.mxu0
        %v543 = vadd.f32 %v339, %v542
        %544 = vmatmul.f32.gmra.mxu0 %v411
        %v545 = vpop.f32.mrf.mxu0
        %v546 = vadd.f32 %v344, %v545
        %547 = vmatmul.f32.gmra.mxu0 %v414
        %v548 = vpop.f32.mrf.mxu0
        %v549 = vadd.f32 %v349, %v548
        %550 = vmatmul.f32.gmra.mxu0 %v417
        %v551 = vpop.f32.mrf.mxu0
        %v552 = vadd.f32 %v354, %v551
        %553 = vmatmul.f32.gmra.mxu0 %v420
        %v554 = vpop.f32.mrf.mxu0
        %v555 = vadd.f32 %v359, %v554
        %556 = vmatmul.f32.gmra.mxu0 %v423
        %v557 = vpop.f32.mrf.mxu0
        %v558 = vadd.f32 %v364, %v557
        %559 = vmatmul.f32.gmra.mxu0 %v426
        %v560 = vpop.f32.mrf.mxu0
        %v561 = vadd.f32 %v369, %v560
        %562 = vmatmul.f32.gmra.mxu0 %v429
        %v563 = vpop.f32.mrf.mxu0
        %v564 = vadd.f32 %v374, %v563
        %565 = vmatmul.f32.gmra.mxu0 %v432
        %v566 = vpop.f32.mrf.mxu0
        %v567 = vadd.f32 %v379, %v566
        %568 = vdwg.mxu0
        %v569 = vmin.f32 %v457, %v463
        %v570 = vmin.f32 %v460, %v466
        %v571 = vmin.f32 %v569, %v469
        %v572 = vmin.f32 %v570, %v472
        %v573 = vmin.f32 %v571, %v475
        %v574 = vmin.f32 %v572, %v478
        %v575 = vmin.f32 %v573, %v481
        %v576 = vmin.f32 %v574, %v484
        %v577 = vmin.f32 %v575, %v487
        %v578 = vmin.f32 %v576, %v490
        %v579 = vmin.f32 %v577, %v493
        %v580 = vmin.f32 %v578, %v496
        %v581 = vmin.f32 %v579, %v499
        %v582 = vmin.f32 %v580, %v502
        %v583 = vmin.f32 %v581, %v582
        %v584 = vrot.slane %v583, 4
        %v585 = vmin.f32 %v583, %v584
        %v586 = vrot.slane %v585, 2
        %v587 = vmin.f32 %v585, %v586
        %v588 = vrot.slane %v587, 1
        %v589 = vmin.f32 %v587, %v588
        %v590 = vmin.f32 %v522, %v528
        %v591 = vmin.f32 %v525, %v531
        %v592 = vmin.f32 %v590, %v534
        %v593 = vmin.f32 %v591, %v537
        %v594 = vmin.f32 %v592, %v540
        %v595 = vmin.f32 %v593, %v543
        %v596 = vmin.f32 %v594, %v546
        %v597 = vmin.f32 %v595, %v549
        %v598 = vmin.f32 %v596, %v552
        %v599 = vmin.f32 %v597, %v555
        %v600 = vmin.f32 %v598, %v558
        %v601 = vmin.f32 %v599, %v561
        %v602 = vmin.f32 %v600, %v564
        %v603 = vmin.f32 %v601, %v567
        %v604 = vmin.f32 %v602, %v603
        %v605 = vrot.slane %v604, 4
        %v606 = vmin.f32 %v604, %v605
        %v607 = vrot.slane %v606, 2
        %v608 = vmin.f32 %v606, %v607
        %v609 = vrot.slane %v608, 1
        %v610 = vmin.f32 %v608, %v609
        %v611 = vlaneseq
        %v612 = vshrl.u32 %v611, 7
        %v613 = vadd.s32 %v612, 8
        %v614 = vadd.s32 %v612, 16
        %v615 = vadd.s32 %v612, 24
        %v616 = vadd.s32 %v612, 32
        %v617 = vadd.s32 %v612, 40
        %v618 = vadd.s32 %v612, 48
        %v619 = vadd.s32 %v612, 56
        %v620 = vadd.s32 %v612, 64
        %v621 = vadd.s32 %v612, 72
        %v622 = vadd.s32 %v612, 80
        %v623 = vadd.s32 %v612, 88
        %v624 = vadd.s32 %v612, 96
        %v625 = vadd.s32 %v612, 104
        %v626 = vadd.s32 %v612, 112
        %v627 = vadd.s32 %v612, 120
        %vm628 = vcmp.eq.f32.partialorder %v457, %v589
        %vm629 = vcmp.eq.f32.partialorder %v522, %v610
        %vm630 = vcmp.eq.f32.partialorder %v460, %v589
        %vm631 = vcmp.eq.f32.partialorder %v525, %v610
        %vm632 = vcmp.eq.f32.partialorder %v463, %v589
        %vm633 = vcmp.eq.f32.partialorder %v528, %v610
        %vm634 = vcmp.eq.f32.partialorder %v466, %v589
        %vm635 = vcmp.eq.f32.partialorder %v531, %v610
        %vm636 = vcmp.eq.f32.partialorder %v469, %v589
        %vm637 = vcmp.eq.f32.partialorder %v534, %v610
        %vm638 = vcmp.eq.f32.partialorder %v472, %v589
        %vm639 = vcmp.eq.f32.partialorder %v537, %v610
        %vm640 = vcmp.eq.f32.partialorder %v475, %v589
        %vm641 = vcmp.eq.f32.partialorder %v540, %v610
        %vm642 = vcmp.eq.f32.partialorder %v478, %v589
        %vm643 = vcmp.eq.f32.partialorder %v543, %v610
        %vm644 = vcmp.eq.f32.partialorder %v481, %v589
        %vm645 = vcmp.eq.f32.partialorder %v546, %v610
        %vm646 = vcmp.eq.f32.partialorder %v484, %v589
        %vm647 = vcmp.eq.f32.partialorder %v549, %v610
        %vm648 = vcmp.eq.f32.partialorder %v487, %v589
        %vm649 = vcmp.eq.f32.partialorder %v552, %v610
        %vm650 = vcmp.eq.f32.partialorder %v490, %v589
        %vm651 = vcmp.eq.f32.partialorder %v555, %v610
        %vm652 = vcmp.eq.f32.partialorder %v493, %v589
        %vm653 = vcmp.eq.f32.partialorder %v558, %v610
        %vm654 = vcmp.eq.f32.partialorder %v496, %v589
        %vm655 = vcmp.eq.f32.partialorder %v561, %v610
        %vm656 = vcmp.eq.f32.partialorder %v499, %v589
        %vm657 = vcmp.eq.f32.partialorder %v564, %v610
        %vm658 = vcmp.eq.f32.partialorder %v502, %v589
        %vm659 = vcmp.eq.f32.partialorder %v567, %v610
        %v660 = vsel %vm628, %v612, 128
        %v661 = vsel %vm629, %v612, 128
        %v662 = vsel %vm630, %v613, 128
        %v663 = vsel %vm631, %v613, 128
        %v664 = vsel %vm632, %v614, 128
        %v665 = vsel %vm633, %v614, 128
        %v666 = vsel %vm634, %v615, 128
        %v667 = vsel %vm635, %v615, 128
        %v668 = vsel %vm636, %v616, 128
        %v669 = vsel %vm637, %v616, 128
        %v670 = vsel %vm638, %v617, 128
        %v671 = vsel %vm639, %v617, 128
        %v672 = vsel %vm640, %v618, 128
        %v673 = vsel %vm641, %v618, 128
        %v674 = vsel %vm642, %v619, 128
        %v675 = vsel %vm643, %v619, 128
        %v676 = vsel %vm644, %v620, 128
        %v677 = vsel %vm645, %v620, 128
        %v678 = vsel %vm646, %v621, 128
        %v679 = vsel %vm647, %v621, 128
        %v680 = vsel %vm648, %v622, 128
        %v681 = vsel %vm649, %v622, 128
        %v682 = vsel %vm650, %v623, 128
        %v683 = vsel %vm651, %v623, 128
        %v684 = vsel %vm652, %v624, 128
        %v685 = vsel %vm653, %v624, 128
        %v686 = vsel %vm654, %v625, 128
        %v687 = vsel %vm655, %v625, 128
        %v688 = vsel %vm656, %v626, 128
        %v689 = vsel %vm657, %v626, 128
        %v690 = vsel %vm658, %v627, 128
        %v691 = vsel %vm659, %v627, 128
        %vm692 = vcmp.lt.s32.totalorder %v660, %v664
        %v693 = vsel %vm692, %v660, %v664
        %vm694 = vcmp.lt.s32.totalorder %v662, %v666
        %v695 = vsel %vm694, %v662, %v666
        %vm696 = vcmp.lt.s32.totalorder %v693, %v668
        %v697 = vsel %vm696, %v693, %v668
        %vm698 = vcmp.lt.s32.totalorder %v695, %v670
        %v699 = vsel %vm698, %v695, %v670
        %vm700 = vcmp.lt.s32.totalorder %v697, %v672
        %v701 = vsel %vm700, %v697, %v672
        %vm702 = vcmp.lt.s32.totalorder %v699, %v674
        %v703 = vsel %vm702, %v699, %v674
        %vm704 = vcmp.lt.s32.totalorder %v701, %v676
        %v705 = vsel %vm704, %v701, %v676
        %vm706 = vcmp.lt.s32.totalorder %v703, %v678
        %v707 = vsel %vm706, %v703, %v678
        %vm708 = vcmp.lt.s32.totalorder %v705, %v680
        %v709 = vsel %vm708, %v705, %v680
        %vm710 = vcmp.lt.s32.totalorder %v707, %v682
        %v711 = vsel %vm710, %v707, %v682
        %vm712 = vcmp.lt.s32.totalorder %v709, %v684
        %v713 = vsel %vm712, %v709, %v684
        %vm714 = vcmp.lt.s32.totalorder %v711, %v686
        %v715 = vsel %vm714, %v711, %v686
        %vm716 = vcmp.lt.s32.totalorder %v713, %v688
        %v717 = vsel %vm716, %v713, %v688
        %vm718 = vcmp.lt.s32.totalorder %v715, %v690
        %v719 = vsel %vm718, %v715, %v690
        %vm720 = vcmp.lt.s32.totalorder %v717, %v719
        %v721 = vsel %vm720, %v717, %v719
        %v722 = vrot.slane %v721, 4
        %vm723 = vcmp.lt.s32.totalorder %v721, %v722
        %v724 = vsel %vm723, %v721, %v722
        %v725 = vrot.slane %v724, 2
        %vm726 = vcmp.lt.s32.totalorder %v724, %v725
        %v727 = vsel %vm726, %v724, %v725
        %v728 = vrot.slane %v727, 1
        %vm729 = vcmp.lt.s32.totalorder %v727, %v728
        %v730 = vsel %vm729, %v727, %v728
        %vm731 = vcmp.lt.s32.totalorder %v661, %v665
        %v732 = vsel %vm731, %v661, %v665
        %vm733 = vcmp.lt.s32.totalorder %v663, %v667
        %v734 = vsel %vm733, %v663, %v667
        %vm735 = vcmp.lt.s32.totalorder %v732, %v669
        %v736 = vsel %vm735, %v732, %v669
        %vm737 = vcmp.lt.s32.totalorder %v734, %v671
        %v738 = vsel %vm737, %v734, %v671
        %vm739 = vcmp.lt.s32.totalorder %v736, %v673
        %v740 = vsel %vm739, %v736, %v673
        %vm741 = vcmp.lt.s32.totalorder %v738, %v675
        %v742 = vsel %vm741, %v738, %v675
        %vm743 = vcmp.lt.s32.totalorder %v740, %v677
        %v744 = vsel %vm743, %v740, %v677
        %vm745 = vcmp.lt.s32.totalorder %v742, %v679
        %v746 = vsel %vm745, %v742, %v679
        %vm747 = vcmp.lt.s32.totalorder %v744, %v681
        %v748 = vsel %vm747, %v744, %v681
        %vm749 = vcmp.lt.s32.totalorder %v746, %v683
        %v750 = vsel %vm749, %v746, %v683
        %vm751 = vcmp.lt.s32.totalorder %v748, %v685
        %v752 = vsel %vm751, %v748, %v685
        %vm753 = vcmp.lt.s32.totalorder %v750, %v687
        %v754 = vsel %vm753, %v750, %v687
        %vm755 = vcmp.lt.s32.totalorder %v752, %v689
        %v756 = vsel %vm755, %v752, %v689
        %vm757 = vcmp.lt.s32.totalorder %v754, %v691
        %v758 = vsel %vm757, %v754, %v691
        %vm759 = vcmp.lt.s32.totalorder %v756, %v758
        %v760 = vsel %vm759, %v756, %v758
        %v761 = vrot.slane %v760, 4
        %vm762 = vcmp.lt.s32.totalorder %v760, %v761
        %v763 = vsel %vm762, %v760, %v761
        %v764 = vrot.slane %v763, 2
        %vm765 = vcmp.lt.s32.totalorder %v763, %v764
        %v766 = vsel %vm765, %v763, %v764
        %v767 = vrot.slane %v766, 1
        %vm768 = vcmp.lt.s32.totalorder %v766, %v767
        %v769 = vsel %vm768, %v766, %v767
        %vm770 = vcmp.eq.s32.totalorder %v612, %v730
        %vm771 = vcmp.eq.s32.totalorder %v612, %v769
        %vm772 = vcmp.eq.s32.totalorder %v613, %v730
        %vm773 = vcmp.eq.s32.totalorder %v613, %v769
        %vm774 = vcmp.eq.s32.totalorder %v614, %v730
        %vm775 = vcmp.eq.s32.totalorder %v614, %v769
        %vm776 = vcmp.eq.s32.totalorder %v615, %v730
        %vm777 = vcmp.eq.s32.totalorder %v615, %v769
        %vm778 = vcmp.eq.s32.totalorder %v616, %v730
        %vm779 = vcmp.eq.s32.totalorder %v616, %v769
        %vm780 = vcmp.eq.s32.totalorder %v617, %v730
        %vm781 = vcmp.eq.s32.totalorder %v617, %v769
        %vm782 = vcmp.eq.s32.totalorder %v618, %v730
        %vm783 = vcmp.eq.s32.totalorder %v618, %v769
        %vm784 = vcmp.eq.s32.totalorder %v619, %v730
        %vm785 = vcmp.eq.s32.totalorder %v619, %v769
        %vm786 = vcmp.eq.s32.totalorder %v620, %v730
        %vm787 = vcmp.eq.s32.totalorder %v620, %v769
        %vm788 = vcmp.eq.s32.totalorder %v621, %v730
        %vm789 = vcmp.eq.s32.totalorder %v621, %v769
        %vm790 = vcmp.eq.s32.totalorder %v622, %v730
        %vm791 = vcmp.eq.s32.totalorder %v622, %v769
        %vm792 = vcmp.eq.s32.totalorder %v623, %v730
        %vm793 = vcmp.eq.s32.totalorder %v623, %v769
        %vm794 = vcmp.eq.s32.totalorder %v624, %v730
        %vm795 = vcmp.eq.s32.totalorder %v624, %v769
        %vm796 = vcmp.eq.s32.totalorder %v625, %v730
        %vm797 = vcmp.eq.s32.totalorder %v625, %v769
        %vm798 = vcmp.eq.s32.totalorder %v626, %v730
        %vm799 = vcmp.eq.s32.totalorder %v626, %v769
        %vm800 = vcmp.eq.s32.totalorder %v627, %v730
        %vm801 = vcmp.eq.s32.totalorder %v627, %v769
        %v802 = vsel %vm770, 1, 0
        %v803 = vsel %vm771, 1, 0
        %v804 = vsel %vm772, 1, 0
        %v805 = vsel %vm773, 1, 0
        %v806 = vsel %vm774, 1, 0
        %v807 = vsel %vm775, 1, 0
        %v808 = vsel %vm776, 1, 0
        %v809 = vsel %vm777, 1, 0
        %v810 = vsel %vm778, 1, 0
        %v811 = vsel %vm779, 1, 0
        %v812 = vsel %vm780, 1, 0
        %v813 = vsel %vm781, 1, 0
        %v814 = vsel %vm782, 1, 0
        %v815 = vsel %vm783, 1, 0
        %v816 = vsel %vm784, 1, 0
        %v817 = vsel %vm785, 1, 0
        %v818 = vsel %vm786, 1, 0
        %v819 = vsel %vm787, 1, 0
        %v820 = vsel %vm788, 1, 0
        %v821 = vsel %vm789, 1, 0
        %v822 = vsel %vm790, 1, 0
        %v823 = vsel %vm791, 1, 0
        %v824 = vsel %vm792, 1, 0
        %v825 = vsel %vm793, 1, 0
        %v826 = vsel %vm794, 1, 0
        %v827 = vsel %vm795, 1, 0
        %v828 = vsel %vm796, 1, 0
        %v829 = vsel %vm797, 1, 0
        %v830 = vsel %vm798, 1, 0
        %v831 = vsel %vm799, 1, 0
        %v832 = vsel %vm800, 1, 0
        %v833 = vsel %vm801, 1, 0
        %v834 = vcvt.s32.f32 %v802
        %v835 = vcvt.s32.f32 %v803
        %v836 = vcvt.s32.f32 %v804
        %v837 = vcvt.s32.f32 %v805
        %v838 = vcvt.s32.f32 %v806
        %v839 = vcvt.s32.f32 %v807
        %v840 = vcvt.s32.f32 %v808
        %v841 = vcvt.s32.f32 %v809
        %v842 = vcvt.s32.f32 %v810
        %v843 = vcvt.s32.f32 %v811
        %v844 = vcvt.s32.f32 %v812
        %v845 = vcvt.s32.f32 %v813
        %v846 = vcvt.s32.f32 %v814
        %v847 = vcvt.s32.f32 %v815
        %v848 = vcvt.s32.f32 %v816
        %v849 = vcvt.s32.f32 %v817
        %v850 = vcvt.s32.f32 %v818
        %v851 = vcvt.s32.f32 %v819
        %v852 = vcvt.s32.f32 %v820
        %v853 = vcvt.s32.f32 %v821
        %v854 = vcvt.s32.f32 %v822
        %v855 = vcvt.s32.f32 %v823
        %v856 = vcvt.s32.f32 %v824
        %v857 = vcvt.s32.f32 %v825
        %v858 = vcvt.s32.f32 %v826
        %v859 = vcvt.s32.f32 %v827
        %v860 = vcvt.s32.f32 %v828
        %v861 = vcvt.s32.f32 %v829
        %v862 = vcvt.s32.f32 %v830
        %v863 = vcvt.s32.f32 %v831
        %v864 = vcvt.s32.f32 %v832
        %v865 = vcvt.s32.f32 %v833
        %v866 = vld [vmem:[%s3] sm:$0xf]
        %867 = vmatpush.msra.mxu0 %v864
        %868 = vmatpush.msra.mxu0 %v862
        %869 = vmatpush.msra.mxu0 %v860
        %870 = vmatpush.msra.mxu0 %v858
        %871 = vmatpush.msra.mxu0 %v856
        %872 = vmatpush.msra.mxu0 %v854
        %873 = vmatpush.msra.mxu0 %v852
        %874 = vmatpush.msra.mxu0 %v850
        %875 = vmatpush.msra.mxu0 %v848
        %876 = vmatpush.msra.mxu0 %v846
        %877 = vmatpush.msra.mxu0 %v844
        %878 = vmatpush.msra.mxu0 %v842
        %879 = vmatpush.msra.mxu0 %v840
        %880 = vmatpush.msra.mxu0 %v838
        %881 = vmatpush.msra.mxu0 %v836
        %882 = vmatpush.msra.mxu0 %v834
        %883 = vmatmul.f32.gmra.mxu0 %v866
        %v884 = vpop.f32.mrf.mxu0
        %v885 = vadd.f32 0.0, %v884
        %886 = vdwg.mxu0
        %887 = vmatpush.msra.mxu0 %v865
        %888 = vmatpush.msra.mxu0 %v863
        %889 = vmatpush.msra.mxu0 %v861
        %890 = vmatpush.msra.mxu0 %v859
        %891 = vmatpush.msra.mxu0 %v857
        %892 = vmatpush.msra.mxu0 %v855
        %893 = vmatpush.msra.mxu0 %v853
        %894 = vmatpush.msra.mxu0 %v851
        %895 = vmatpush.msra.mxu0 %v849
        %896 = vmatpush.msra.mxu0 %v847
        %897 = vmatpush.msra.mxu0 %v845
        %898 = vmatpush.msra.mxu0 %v843
        %899 = vmatpush.msra.mxu0 %v841
        %900 = vmatpush.msra.mxu0 %v839
        %901 = vmatpush.msra.mxu0 %v837
        %902 = vmatpush.msra.mxu0 %v835
        %903 = vmatmul.f32.gmra.mxu0 %v866
        %v904 = vpop.f32.mrf.mxu0
        %v905 = vadd.f32 0.0, %v904
        %906 = vdwg.mxu0
        %v909 = vrot.slane %v905, 4
        %v910 = vsel %vm434, %v885, %v909
        %912 = vst [vmem:[%s248] sm:$0xff] %v910
        %v913 = vrot.slane %v769, 7
        %vm914 = vcmask 1040384
        %v915 = vsel %vm914, %v730, %v913
        %v916 = vlaneseq
        %vm917 = vcmp.ge.s32.totalorder %v916, 0
        %vm918 = vcmp.lt.s32.totalorder %v916, 256
        %vm919 = vmand %vm917, %vm918
        %920 = vst.msk [vmem:[%s255] sm:$0x3] %vm919, %v915
        %s921 = sand.u32 %s136, 1
        %s922 = scalar_lea.sflag [#allocation3], %s921
        %s923 = sand.u32 %s136, 1
        %s924 = smul.addr %s923, 8
        %s925 = scalar_lea.vmem [#allocation2], %s924
        %s926 = sand.u32 %s164, 1
        %s927 = scalar_lea.sflag [#allocation5], %s926
        %s928 = sand.u32 %s164, 1
        %s929 = smul.addr %s928, 2
        %s930 = scalar_lea.vmem [#allocation4], %s929
        // Predicated region
        $region37: #{tpu_custom_call.1} parent=35 // pred_check
          %p931 = pneg %p146
        $region38: #{tpu_custom_call.1} parent=35 // pred_check_branch
          %933 = sbr.rel (%p931) target = $region40
        $region39: #{tpu_custom_call.1} parent=35 // pred_region
          %s934 = smul.u32 2, %s28
          %936 = vsyncadd %s922, 0
          %s937 = smul.addr %s27, 2
          %s938 = sadd.s32 %s934, %s937
          %s939 = smul.addr %s938, 4
          %s940 = scalar_lea.hbm %s4, %s939
          %s942 = sshll.u32 %s925, 4
          %s943 = int_to_ptr.vmem [resolvable:$true] %s942
          %s944 = sshll.u32 %s940, 4
          %s945 = int_to_ptr.hbm [resolvable:$true] %s944
          %947 = dma.vmem_to_hbm [thread:$0]  %s943, 128, %s945, %s922
        $region40: #{tpu_custom_call.1} parent=35 // pred_fallthru
          _
        // Predicated region
        $region41: #{tpu_custom_call.1} parent=35 // pred_check
          %p948 = pneg %p174
        $region42: #{tpu_custom_call.1} parent=35 // pred_check_branch
          %950 = sbr.rel (%p948) target = $region44
        $region43: #{tpu_custom_call.1} parent=35 // pred_region
          %s951 = smul.u32 2, %s28
          %953 = vsyncadd %s927, 0
          %s954 = smul.addr %s27, 2
          %s955 = sadd.s32 %s951, %s954
          %s956 = scalar_lea.hbm %s5, %s955
          %s958 = sshll.u32 %s930, 4
          %s959 = int_to_ptr.vmem [resolvable:$true] %s958
          %s960 = sshll.u32 %s956, 4
          %s961 = int_to_ptr.hbm [resolvable:$true] %s960
          %963 = dma.vmem_to_hbm [thread:$0]  %s959, 32, %s961, %s927
        $region44: #{tpu_custom_call.1} parent=35 // pred_fallthru
          _
      $region36: #{tpu_custom_call.1} parent=5 // pred_fallthru
        _
      %p964 = scmp.le.s32.totalorder 2, %s18
      // Predicated region
      $region45: #{tpu_custom_call.1} parent=5 // pred_check
        %p965 = pneg %p964
      $region46: #{tpu_custom_call.1} parent=5 // pred_check_branch
        %967 = sbr.rel (%p965) target = $region48
      $region47: #{tpu_custom_call.1} parent=5 // pred_region
        %s968 = ssub.s32 %s18, 2
        // Predicated region
        $region49: #{tpu_custom_call.1} parent=47 // pred_check
          %p969 = pneg %p152
        $region50: #{tpu_custom_call.1} parent=47 // pred_check_branch
          %971 = sbr.rel (%p969) target = $region52
        $region51: #{tpu_custom_call.1} parent=47 // pred_region
          %s972 = sand.u32 %s137, 1
          %s973 = scalar_lea.sflag [#allocation3], %s972
          %s974 = sand.u32 %s137, 1
          %s975 = smul.addr %s974, 8
          %s976 = scalar_lea.vmem [#allocation2], %s975
          %978 = dma.done %s973, 128
        $region52: #{tpu_custom_call.1} parent=47 // pred_fallthru
          _
        // Predicated region
        $region53: #{tpu_custom_call.1} parent=47 // pred_check
          %p979 = pneg %p180
        $region54: #{tpu_custom_call.1} parent=47 // pred_check_branch
          %981 = sbr.rel (%p979) target = $region56
        $region55: #{tpu_custom_call.1} parent=47 // pred_region
          %s982 = sand.u32 %s165, 1
          %s983 = scalar_lea.sflag [#allocation5], %s982
          %s984 = sand.u32 %s165, 1
          %s985 = smul.addr %s984, 2
          %s986 = scalar_lea.vmem [#allocation4], %s985
          %988 = dma.done %s983, 32
        $region56: #{tpu_custom_call.1} parent=47 // pred_fallthru
          _
      $region48: #{tpu_custom_call.1} parent=5 // pred_fallthru
        _
    $region6: #{tpu_custom_call.1} parent=1 // loop_footer
      %s22 = sadd.s32 1, %s18
    $region7: #{tpu_custom_call.1} parent=1 // loop_footer_branch
      %17 = sbr.rel target = $region3
    $region8: #{tpu_custom_call.1} parent=1 // loop_exit
      _
    %989 = vsyncpa [#allocation3], 1
    %s990 = scalar_lea.sflag [#allocation3], 1
    %991 = vsyncpa %s990, 1
    %992 = vsyncpa [#allocation5], 1
    %s993 = scalar_lea.sflag [#allocation5], 1
    %994 = vsyncpa %s993, 1

// kernel: tpu_custom_call.1
$region0: #{tpu_custom_call.1}
  #allocation0 [shape = 'u32[]', space=smem, size = 0x4, offset = 0x4, fixed_abs, tag = 'smem constant byte address 0x4 - core index']
  #allocation1 [shape = 'u32[72,128]{1,0:T(1,128)}', space=vmem, size = 0x9000, scoped, tag = 'internal scratch']
  %s0 = inlined_call_operand.vmem [shape: f32[2,4,256], index: 0, kind: input, shape index: {}]
  %s1 = inlined_call_operand.vmem [shape: f32[128,4], index: 1, kind: input, shape index: {}]
  %s2 = inlined_call_operand.vmem [shape: f32[128,1], index: 2, kind: input, shape index: {}]
  %s3 = inlined_call_operand.vmem [shape: f32[4,128], index: 3, kind: input, shape index: {}]
  %s4 = inlined_call_operand.hbm [shape: f32[2,4,256], index: 4, kind: output, shape index: {0}]
  %s5 = inlined_call_operand.hbm [shape: s32[2,1,256], index: 5, kind: output, shape index: {1}]
  %6 = xla_tuple %s4, %s5
  %s7 = sld [smem:[#allocation0]]
  $region57: #{tpu_custom_call.1} parent=0
    _
  %s9 = ssub.s32 1, %s7
  %s10 = scalar_select 0, %s9, %s7
  $region1: #{tpu_custom_call.1} parent=0
    #allocation2 [shape = 'u8[8192]{0}', space=vmem, size = 0x2000, scoped, tag = 'output window, operand 0']
    #allocation3 [shape = 's32[2]{0}', space=sflag, size = 0x8, scoped, tag = 'scoped memory for tpu_custom_call.1']
    #allocation4 [shape = 'u8[2048]{0}', space=vmem, size = 0x800, scoped, tag = 'output window, operand 1']
    #allocation5 [shape = 's32[2]{0}', space=sflag, size = 0x8, scoped, tag = 'scoped memory for tpu_custom_call.1']
    %11 = vsyncpa [#allocation3], 0
    %s12 = scalar_lea.sflag [#allocation3], 1
    %13 = vsyncpa %s12, 0
    %14 = vsyncpa [#allocation5], 0
    %s15 = scalar_lea.sflag [#allocation5], 1
    %16 = vsyncpa %s15, 0
    loop: start=0, step=1, limit=4
    $region2: #{tpu_custom_call.1} parent=1 // loop_pre_header
      _
    $region3: #{tpu_custom_call.1} parent=1 // loop_header
      %s18 = sphi 0, %s22
      %p19 = scmp.ge.s32.totalorder %s18, 4
      %s25 = sphi 0, %s37
      %s26 = sphi 0, %s33
      %s27 = sphi 0, %s25
      %s28 = sphi 0, %s26
      %s29 = sphi 0, %s27
      %s30 = sphi 0, %s28
      %s42 = sphi 0, %s44
      %s45 = sphi 0, %s42
      %s46 = sphi 0, %s45
      %s62 = sphi 0, %s46
      %s66 = sphi 0, %s66
      %s68 = sphi 0, %s66
      %s69 = sphi 0, %s68
      %s83 = sphi 0, %s69
      %s87 = sphi 0, %s87
      %s89 = sphi 0, %s87
      %s90 = sphi 0, %s89
      %s104 = sphi 0, %s90
      %s108 = sphi 0, %s108
      %s110 = sphi 0, %s108
      %s111 = sphi 0, %s110
      %s125 = sphi 0, %s111
      %s133 = sphi 0, %s135
      %s136 = sphi 0, %s133
      %s137 = sphi 0, %s136
      %s153 = sphi 0, %s137
      %s161 = sphi 0, %s163
      %s164 = sphi 0, %s161
      %s165 = sphi 0, %s164
      %s181 = sphi 0, %s165
    $region4: #{tpu_custom_call.1} parent=1 // loop_header_branch
      %21 = sbr.rel (%p19) target = $region8
    $region5: #{tpu_custom_call.1} parent=1 // loop_body
      %s23 = ssub.s32 %s18, 1
      %s24 = ssub.s32 %s18, 2
      %s31 = sadd.s32 1, %s26
      %p32 = scmp.ge.s32.totalorder %s31, 1
      %s33 = scalar_select %p32, 0, %s31
      %s34 = sadd.s32 1, %s25
      %s35 = scalar_select %p32, %s34, %s25
      %p36 = scmp.ge.s32.totalorder %s35, 2
      %s37 = scalar_select %p36, 0, %s35
      %s38 = ssub.s32 %s25, %s37
      %s39 = ssub.s32 %s26, %s33
      %s40 = sor.u32 %s38, %s39
      %p41 = scmp.eq.s32.totalorder %s40, 0
      %s43 = sadd.s32 %s42, 1
      %s44 = scalar_select %p41, %s42, %s43
      %p47 = pneg %p41
      %p48 = scmp.eq.s32.totalorder %s18, 1
      %p49 = por %p47, %p48
      %p50 = scmp.ne.s32.totalorder %s42, %s45
      %p51 = scmp.eq.s32.totalorder %s18, 0
      %p52 = por %p50, %p51
      %p53 = scmp.ne.s32.totalorder %s42, %s45
      %p54 = scmp.eq.s32.totalorder %s23, 1
      %p55 = por %p53, %p54
      %p56 = scmp.ne.s32.totalorder %s45, %s46
      %p57 = scmp.eq.s32.totalorder %s23, 0
      %p58 = por %p56, %p57
      %p59 = scmp.ne.s32.totalorder %s45, %s46
      %p60 = scmp.eq.s32.totalorder %s24, 1
      %p61 = por %p59, %p60
      %p63 = scmp.ne.s32.totalorder %s46, %s62
      %p64 = scmp.eq.s32.totalorder %s24, 0
      %p65 = por %p63, %p64
      %s67 = sadd.s32 %s66, 1
      %p70 = scmp.eq.s32.totalorder %s18, 1
      %p71 = scmp.ne.s32.totalorder %s66, %s68
      %p72 = scmp.eq.s32.totalorder %s18, 0
      %p73 = por %p71, %p72
      %p74 = scmp.ne.s32.totalorder %s66, %s68
      %p75 = scmp.eq.s32.totalorder %s23, 1
      %p76 = por %p74, %p75
      %p77 = scmp.ne.s32.totalorder %s68, %s69
      %p78 = scmp.eq.s32.totalorder %s23, 0
      %p79 = por %p77, %p78
      %p80 = scmp.ne.s32.totalorder %s68, %s69
      %p81 = scmp.eq.s32.totalorder %s24, 1
      %p82 = por %p80, %p81
      %p84 = scmp.ne.s32.totalorder %s69, %s83
      %p85 = scmp.eq.s32.totalorder %s24, 0
      %p86 = por %p84, %p85
      %s88 = sadd.s32 %s87, 1
      %p91 = scmp.eq.s32.totalorder %s18, 1
      %p92 = scmp.ne.s32.totalorder %s87, %s89
      %p93 = scmp.eq.s32.totalorder %s18, 0
      %p94 = por %p92, %p93
      %p95 = scmp.ne.s32.totalorder %s87, %s89
      %p96 = scmp.eq.s32.totalorder %s23, 1
      %p97 = por %p95, %p96
      %p98 = scmp.ne.s32.totalorder %s89, %s90
      %p99 = scmp.eq.s32.totalorder %s23, 0
      %p100 = por %p98, %p99
      %p101 = scmp.ne.s32.totalorder %s89, %s90
      %p102 = scmp.eq.s32.totalorder %s24, 1
      %p103 = por %p101, %p102
      %p105 = scmp.ne.s32.totalorder %s90, %s104
      %p106 = scmp.eq.s32.totalorder %s24, 0
      %p107 = por %p105, %p106
      %s109 = sadd.s32 %s108, 1
      %p112 = scmp.eq.s32.totalorder %s18, 1
      %p113 = scmp.ne.s32.totalorder %s108, %s110
      %p114 = scmp.eq.s32.totalorder %s18, 0
      %p115 = por %p113, %p114
      %p116 = scmp.ne.s32.totalorder %s108, %s110
      %p117 = scmp.eq.s32.totalorder %s23, 1
      %p118 = por %p116, %p117
      %p119 = scmp.ne.s32.totalorder %s110, %s111
      %p120 = scmp.eq.s32.totalorder %s23, 0
      %p121 = por %p119, %p120
      %p122 = scmp.ne.s32.totalorder %s110, %s111
      %p123 = scmp.eq.s32.totalorder %s24, 1
      %p124 = por %p122, %p123
      %p126 = scmp.ne.s32.totalorder %s111, %s125
      %p127 = scmp.eq.s32.totalorder %s24, 0
      %p128 = por %p126, %p127
      %s129 = ssub.s32 %s25, %s37
      %s130 = ssub.s32 %s26, %s33
      %s131 = sor.u32 %s129, %s130
      %p132 = scmp.eq.s32.totalorder %s131, 0
      %s134 = sadd.s32 %s133, 1
      %s135 = scalar_select %p132, %s133, %s134
      %p138 = pneg %p132
      %p139 = scmp.eq.s32.totalorder %s18, 1
      %p140 = por %p138, %p139
      %p141 = scmp.ne.s32.totalorder %s133, %s136
      %p142 = scmp.eq.s32.totalorder %s18, 0
      %p143 = por %p141, %p142
      %p144 = scmp.ne.s32.totalorder %s133, %s136
      %p145 = scmp.eq.s32.totalorder %s23, 1
      %p146 = por %p144, %p145
      %p147 = scmp.ne.s32.totalorder %s136, %s137
      %p148 = scmp.eq.s32.totalorder %s23, 0
      %p149 = por %p147, %p148
      %p150 = scmp.ne.s32.totalorder %s136, %s137
      %p151 = scmp.eq.s32.totalorder %s24, 1
      %p152 = por %p150, %p151
      %p154 = scmp.ne.s32.totalorder %s137, %s153
      %p155 = scmp.eq.s32.totalorder %s24, 0
      %p156 = por %p154, %p155
      %s157 = ssub.s32 %s25, %s37
      %s158 = ssub.s32 %s26, %s33
      %s159 = sor.u32 %s157, %s158
      %p160 = scmp.eq.s32.totalorder %s159, 0
      %s162 = sadd.s32 %s161, 1
      %s163 = scalar_select %p160, %s161, %s162
      %p166 = pneg %p160
      %p167 = scmp.eq.s32.totalorder %s18, 1
      %p168 = por %p166, %p167
      %p169 = scmp.ne.s32.totalorder %s161, %s164
      %p170 = scmp.eq.s32.totalorder %s18, 0
      %p171 = por %p169, %p170
      %p172 = scmp.ne.s32.totalorder %s161, %s164
      %p173 = scmp.eq.s32.totalorder %s23, 1
      %p174 = por %p172, %p173
      %p175 = scmp.ne.s32.totalorder %s164, %s165
      %p176 = scmp.eq.s32.totalorder %s23, 0
      %p177 = por %p175, %p176
      %p178 = scmp.ne.s32.totalorder %s164, %s165
      %p179 = scmp.eq.s32.totalorder %s24, 1
      %p180 = por %p178, %p179
      %p182 = scmp.ne.s32.totalorder %s165, %s181
      %p183 = scmp.eq.s32.totalorder %s24, 0
      %p184 = por %p182, %p183
      %p185 = scmp.le.s32.totalorder 1, %s18
      %p186 = scmp.lt.s32.totalorder %s18, 3
      %p187 = pnand %p185, %p186
      %p188 = pneg %p187
      // Predicated region
      $region9: #{tpu_custom_call.1} parent=5 // pred_check
        _
      $region10: #{tpu_custom_call.1} parent=5 // pred_check_branch
        %190 = sbr.rel (%p187) target = $region12
      $region11: #{tpu_custom_call.1} parent=5 // pred_region
        %s191 = ssub.s32 %s18, 1
        // Predicated region
        $region13: #{tpu_custom_call.1} parent=11 // pred_check
          %p192 = pneg %p79
        $region14: #{tpu_custom_call.1} parent=11 // pred_check_branch
          %194 = sbr.rel (%p192) target = $region16
        $region15: #{tpu_custom_call.1} parent=11 // pred_region
          _
        $region16: #{tpu_custom_call.1} parent=11 // pred_fallthru
          _
        // Predicated region
        $region17: #{tpu_custom_call.1} parent=11 // pred_check
          %p195 = pneg %p100
        $region18: #{tpu_custom_call.1} parent=11 // pred_check_branch
          %197 = sbr.rel (%p195) target = $region20
        $region19: #{tpu_custom_call.1} parent=11 // pred_region
          _
        $region20: #{tpu_custom_call.1} parent=11 // pred_fallthru
          _
        // Predicated region
        $region21: #{tpu_custom_call.1} parent=11 // pred_check
          %p198 = pneg %p121
        $region22: #{tpu_custom_call.1} parent=11 // pred_check_branch
          %200 = sbr.rel (%p198) target = $region24
        $region23: #{tpu_custom_call.1} parent=11 // pred_region
          _
        $region24: #{tpu_custom_call.1} parent=11 // pred_fallthru
          _
      $region12: #{tpu_custom_call.1} parent=5 // pred_fallthru
        _
      %p201 = scmp.lt.s32.totalorder %s18, 2
      // Predicated region
      $region25: #{tpu_custom_call.1} parent=5 // pred_check
        %p202 = pneg %p201
      $region26: #{tpu_custom_call.1} parent=5 // pred_check_branch
        %204 = sbr.rel (%p202) target = $region28
      $region27: #{tpu_custom_call.1} parent=5 // pred_region
        // Predicated region
        $region29: #{tpu_custom_call.1} parent=27 // pred_check
          %p205 = pneg %p52
        $region30: #{tpu_custom_call.1} parent=27 // pred_check_branch
          %207 = sbr.rel (%p205) target = $region32
        $region31: #{tpu_custom_call.1} parent=27 // pred_region
          %s208 = smul.u32 2, %s26
          %p209 = scmp.lt.s32.totalorder %s25, 1
          %s210 = scalar_select %p209, %s25, 1
          %p211 = scmp.lt.s32.totalorder %s208, 1
          %s212 = scalar_select %p211, %s208, 1
          %s213 = smul.addr %s210, 2
          %s214 = sadd.s32 %s212, %s213
          %s215 = smul.addr %s214, 4
          %s216 = scalar_lea.vmem %s0, %s215
          %s217 = smul.u32 2, %s26
        $region32: #{tpu_custom_call.1} parent=27 // pred_fallthru
          _
      $region28: #{tpu_custom_call.1} parent=5 // pred_fallthru
        _
      %p218 = scmp.le.s32.totalorder 1, %s18
      %p219 = scmp.lt.s32.totalorder %s18, 3
      %p220 = pnand %p218, %p219
      %p221 = pneg %p220
      // Predicated region
      $region33: #{tpu_custom_call.1} parent=5 // pred_check
        _
      $region34: #{tpu_custom_call.1} parent=5 // pred_check_branch
        %223 = sbr.rel (%p220) target = $region36
      $region35: #{tpu_custom_call.1} parent=5 // pred_region
        %s224 = ssub.s32 %s18, 1
        %s225 = smul.u32 2, %s28
        %p226 = scmp.lt.s32.totalorder %s27, 1
        %s227 = scalar_select %p226, %s27, 1
        %p228 = scmp.lt.s32.totalorder %s225, 1
        %s229 = scalar_select %p228, %s225, 1
        %s230 = smul.addr %s227, 2
        %s231 = sadd.s32 %s229, %s230
        %s232 = smul.addr %s231, 4
        %s233 = scalar_lea.vmem %s0, %s232
        %p234 = pneg %p58
        %p235 = pneg %p55
        %p236 = pneg %p79
        %p237 = pneg %p76
        %p238 = pneg %p100
        %p239 = pneg %p97
        %p240 = pneg %p121
        %p241 = pneg %p118
        %p242 = pneg %p149
        %p243 = pneg %p146
        %s244 = sand.u32 %s136, 1
        %s245 = scalar_lea.sflag [#allocation3], %s244
        %s246 = sand.u32 %s136, 1
        %s247 = smul.addr %s246, 8
        %s248 = scalar_lea.vmem [#allocation2], %s247
        %p249 = pneg %p177
        %p250 = pneg %p174
        %s251 = sand.u32 %s164, 1
        %s252 = scalar_lea.sflag [#allocation5], %s251
        %s253 = sand.u32 %s164, 1
        %s254 = smul.addr %s253, 2
        %s255 = scalar_lea.vmem [#allocation4], %s254
        %s256 = smul.u32 2, %s28
        %p257 = scmp.lt.s32.totalorder %s27, 1
        %s258 = scalar_select %p257, %s27, 1
        %p259 = scmp.lt.s32.totalorder %s256, 1
        %s260 = scalar_select %p259, %s256, 1
        %s261 = smul.addr %s258, 2
        %s262 = sadd.s32 %s260, %s261
        %s263 = smul.addr %s262, 4
        %s264 = scalar_lea.vmem %s0, %s263
        %s265 = smul.u32 2, %s28
        %s266 = smul.u32 2, %s28
        %s267 = smul.u32 2, %s28
        %v268 = vld [vmem:[%s264] sm:$0xff]
        %v269 = vld [vmem:[%s1] sm:$0xff]
        %v270 = vld [vmem:[%s1 + $0x8] sm:$0xff]
        %v271 = vld [vmem:[%s1 + $0x10] sm:$0xff]
        %v272 = vld [vmem:[%s1 + $0x18] sm:$0xff]
        %v273 = vld [vmem:[%s1 + $0x20] sm:$0xff]
        %v274 = vld [vmem:[%s1 + $0x28] sm:$0xff]
        %v275 = vld [vmem:[%s1 + $0x30] sm:$0xff]
        %v276 = vld [vmem:[%s1 + $0x38] sm:$0xff]
        %v277 = vld [vmem:[%s1 + $0x40] sm:$0xff]
        %v278 = vld [vmem:[%s1 + $0x48] sm:$0xff]
        %v279 = vld [vmem:[%s1 + $0x50] sm:$0xff]
        %v280 = vld [vmem:[%s1 + $0x58] sm:$0xff]
        %v281 = vld [vmem:[%s1 + $0x60] sm:$0xff]
        %v282 = vld [vmem:[%s1 + $0x68] sm:$0xff]
        %v283 = vld [vmem:[%s1 + $0x70] sm:$0xff]
        %v284 = vld [vmem:[%s1 + $0x78] sm:$0xff]
        %v285 = vld [vmem:[%s2] sm:$0xff]
        %v286 = vld [vmem:[%s2 + $0x8] sm:$0xff]
        %v287 = vld [vmem:[%s2 + $0x10] sm:$0xff]
        %v288 = vld [vmem:[%s2 + $0x18] sm:$0xff]
        %v289 = vld [vmem:[%s2 + $0x20] sm:$0xff]
        %v290 = vld [vmem:[%s2 + $0x28] sm:$0xff]
        %v291 = vld [vmem:[%s2 + $0x30] sm:$0xff]
        %v292 = vld [vmem:[%s2 + $0x38] sm:$0xff]
        %v293 = vld [vmem:[%s2 + $0x40] sm:$0xff]
        %v294 = vld [vmem:[%s2 + $0x48] sm:$0xff]
        %v295 = vld [vmem:[%s2 + $0x50] sm:$0xff]
        %v296 = vld [vmem:[%s2 + $0x58] sm:$0xff]
        %v297 = vld [vmem:[%s2 + $0x60] sm:$0xff]
        %v298 = vld [vmem:[%s2 + $0x68] sm:$0xff]
        %v299 = vld [vmem:[%s2 + $0x70] sm:$0xff]
        %v300 = vld [vmem:[%s2 + $0x78] sm:$0xff]
        %302 = vset.pattern.permute.xlu0 0
        %303 = vperm.xlu0 %302, %v285
        %v304 = vpop.permute.xlu0 %303
        %307 = vset.pattern.permute.xlu0 0
        %308 = vperm.xlu0 %307, %v286
        %v309 = vpop.permute.xlu0 %308
        %312 = vset.pattern.permute.xlu0 0
        %313 = vperm.xlu0 %312, %v287
        %v314 = vpop.permute.xlu0 %313
        %317 = vset.pattern.permute.xlu0 0
        %318 = vperm.xlu0 %317, %v288
        %v319 = vpop.permute.xlu0 %318
        %322 = vset.pattern.permute.xlu0 0
        %323 = vperm.xlu0 %322, %v289
        %v324 = vpop.permute.xlu0 %323
        %327 = vset.pattern.permute.xlu0 0
        %328 = vperm.xlu0 %327, %v290
        %v329 = vpop.permute.xlu0 %328
        %332 = vset.pattern.permute.xlu0 0
        %333 = vperm.xlu0 %332, %v291
        %v334 = vpop.permute.xlu0 %333
        %337 = vset.pattern.permute.xlu0 0
        %338 = vperm.xlu0 %337, %v292
        %v339 = vpop.permute.xlu0 %338
        %342 = vset.pattern.permute.xlu0 0
        %343 = vperm.xlu0 %342, %v293
        %v344 = vpop.permute.xlu0 %343
        %347 = vset.pattern.permute.xlu0 0
        %348 = vperm.xlu0 %347, %v294
        %v349 = vpop.permute.xlu0 %348
        %352 = vset.pattern.permute.xlu0 0
        %353 = vperm.xlu0 %352, %v295
        %v354 = vpop.permute.xlu0 %353
        %357 = vset.pattern.permute.xlu0 0
        %358 = vperm.xlu0 %357, %v296
        %v359 = vpop.permute.xlu0 %358
        %362 = vset.pattern.permute.xlu0 0
        %363 = vperm.xlu0 %362, %v297
        %v364 = vpop.permute.xlu0 %363
        %367 = vset.pattern.permute.xlu0 0
        %368 = vperm.xlu0 %367, %v298
        %v369 = vpop.permute.xlu0 %368
        %372 = vset.pattern.permute.xlu0 0
        %373 = vperm.xlu0 %372, %v299
        %v374 = vpop.permute.xlu0 %373
        %377 = vset.pattern.permute.xlu0 0
        %378 = vperm.xlu0 %377, %v300
        %v379 = vpop.permute.xlu0 %378
        %382 = vst [vmem:[#allocation1] ss:$2 sm:$0xff] %v268
        %v383 = vld.sshfl [vmem:[#allocation1] sm:$0xff pattern:$0x75316420]
        %v384 = vld.sshfl [vmem:[#allocation1 + $0x8] sm:$0xff pattern:$0x75316420]
        %vm385 = vcmask 31744
        %v387 = vsel %vm385, %v269, 0
        %v390 = vsel %vm385, %v270, 0
        %v393 = vsel %vm385, %v271, 0
        %v396 = vsel %vm385, %v272, 0
        %v399 = vsel %vm385, %v273, 0
        %v402 = vsel %vm385, %v274, 0
        %v405 = vsel %vm385, %v275, 0
        %v408 = vsel %vm385, %v276, 0
        %v411 = vsel %vm385, %v277, 0
        %v414 = vsel %vm385, %v278, 0
        %v417 = vsel %vm385, %v279, 0
        %v420 = vsel %vm385, %v280, 0
        %v423 = vsel %vm385, %v281, 0
        %v426 = vsel %vm385, %v282, 0
        %v429 = vsel %vm385, %v283, 0
        %v432 = vsel %vm385, %v284, 0
        %vm434 = vcmask 1043456
        %v435 = vsel %vm434, %v383, 0
        %v437 = vsel %vm434, %v384, 0
        %439 = vmatpush.msra.mxu0 0.0
        %440 = vmatpush.msra.mxu0 0.0
        %441 = vmatpush.msra.mxu0 0.0
        %442 = vmatpush.msra.mxu0 0.0
        %443 = vmatpush.msra.mxu0 0.0
        %444 = vmatpush.msra.mxu0 0.0
        %445 = vmatpush.msra.mxu0 0.0
        %446 = vmatpush.msra.mxu0 0.0
        %447 = vmatpush.msra.mxu0 0.0
        %448 = vmatpush.msra.mxu0 0.0
        %449 = vmatpush.msra.mxu0 0.0
        %450 = vmatpush.msra.mxu0 0.0
        %451 = vmatpush.msra.mxu0 0.0
        %452 = vmatpush.msra.mxu0 0.0
        %453 = vmatpush.msra.mxu0 0.0
        %454 = vmatpush.msra.mxu0 %v435
        %455 = vmatmul.f32.gmra.mxu0 %v387
        %v456 = vpop.f32.mrf.mxu0
        %v457 = vadd.f32 %v304, %v456
        %458 = vmatmul.f32.gmra.mxu0 %v390
        %v459 = vpop.f32.mrf.mxu0
        %v460 = vadd.f32 %v309, %v459
        %461 = vmatmul.f32.gmra.mxu0 %v393
        %v462 = vpop.f32.mrf.mxu0
        %v463 = vadd.f32 %v314, %v462
        %464 = vmatmul.f32.gmra.mxu0 %v396
        %v465 = vpop.f32.mrf.mxu0
        %v466 = vadd.f32 %v319, %v465
        %467 = vmatmul.f32.gmra.mxu0 %v399
        %v468 = vpop.f32.mrf.mxu0
        %v469 = vadd.f32 %v324, %v468
        %470 = vmatmul.f32.gmra.mxu0 %v402
        %v471 = vpop.f32.mrf.mxu0
        %v472 = vadd.f32 %v329, %v471
        %473 = vmatmul.f32.gmra.mxu0 %v405
        %v474 = vpop.f32.mrf.mxu0
        %v475 = vadd.f32 %v334, %v474
        %476 = vmatmul.f32.gmra.mxu0 %v408
        %v477 = vpop.f32.mrf.mxu0
        %v478 = vadd.f32 %v339, %v477
        %479 = vmatmul.f32.gmra.mxu0 %v411
        %v480 = vpop.f32.mrf.mxu0
        %v481 = vadd.f32 %v344, %v480
        %482 = vmatmul.f32.gmra.mxu0 %v414
        %v483 = vpop.f32.mrf.mxu0
        %v484 = vadd.f32 %v349, %v483
        %485 = vmatmul.f32.gmra.mxu0 %v417
        %v486 = vpop.f32.mrf.mxu0
        %v487 = vadd.f32 %v354, %v486
        %488 = vmatmul.f32.gmra.mxu0 %v420
        %v489 = vpop.f32.mrf.mxu0
        %v490 = vadd.f32 %v359, %v489
        %491 = vmatmul.f32.gmra.mxu0 %v423
        %v492 = vpop.f32.mrf.mxu0
        %v493 = vadd.f32 %v364, %v492
        %494 = vmatmul.f32.gmra.mxu0 %v426
        %v495 = vpop.f32.mrf.mxu0
        %v496 = vadd.f32 %v369, %v495
        %497 = vmatmul.f32.gmra.mxu0 %v429
        %v498 = vpop.f32.mrf.mxu0
        %v499 = vadd.f32 %v374, %v498
        %500 = vmatmul.f32.gmra.mxu0 %v432
        %v501 = vpop.f32.mrf.mxu0
        %v502 = vadd.f32 %v379, %v501
        %503 = vdwg.mxu0
        %504 = vmatpush.msra.mxu0 0.0
        %505 = vmatpush.msra.mxu0 0.0
        %506 = vmatpush.msra.mxu0 0.0
        %507 = vmatpush.msra.mxu0 0.0
        %508 = vmatpush.msra.mxu0 0.0
        %509 = vmatpush.msra.mxu0 0.0
        %510 = vmatpush.msra.mxu0 0.0
        %511 = vmatpush.msra.mxu0 0.0
        %512 = vmatpush.msra.mxu0 0.0
        %513 = vmatpush.msra.mxu0 0.0
        %514 = vmatpush.msra.mxu0 0.0
        %515 = vmatpush.msra.mxu0 0.0
        %516 = vmatpush.msra.mxu0 0.0
        %517 = vmatpush.msra.mxu0 0.0
        %518 = vmatpush.msra.mxu0 0.0
        %519 = vmatpush.msra.mxu0 %v437
        %520 = vmatmul.f32.gmra.mxu0 %v387
        %v521 = vpop.f32.mrf.mxu0
        %v522 = vadd.f32 %v304, %v521
        %523 = vmatmul.f32.gmra.mxu0 %v390
        %v524 = vpop.f32.mrf.mxu0
        %v525 = vadd.f32 %v309, %v524
        %526 = vmatmul.f32.gmra.mxu0 %v393
        %v527 = vpop.f32.mrf.mxu0
        %v528 = vadd.f32 %v314, %v527
        %529 = vmatmul.f32.gmra.mxu0 %v396
        %v530 = vpop.f32.mrf.mxu0
        %v531 = vadd.f32 %v319, %v530
        %532 = vmatmul.f32.gmra.mxu0 %v399
        %v533 = vpop.f32.mrf.mxu0
        %v534 = vadd.f32 %v324, %v533
        %535 = vmatmul.f32.gmra.mxu0 %v402
        %v536 = vpop.f32.mrf.mxu0
        %v537 = vadd.f32 %v329, %v536
        %538 = vmatmul.f32.gmra.mxu0 %v405
        %v539 = vpop.f32.mrf.mxu0
        %v540 = vadd.f32 %v334, %v539
        %541 = vmatmul.f32.gmra.mxu0 %v408
        %v542 = vpop.f32.mrf.mxu0
        %v543 = vadd.f32 %v339, %v542
        %544 = vmatmul.f32.gmra.mxu0 %v411
        %v545 = vpop.f32.mrf.mxu0
        %v546 = vadd.f32 %v344, %v545
        %547 = vmatmul.f32.gmra.mxu0 %v414
        %v548 = vpop.f32.mrf.mxu0
        %v549 = vadd.f32 %v349, %v548
        %550 = vmatmul.f32.gmra.mxu0 %v417
        %v551 = vpop.f32.mrf.mxu0
        %v552 = vadd.f32 %v354, %v551
        %553 = vmatmul.f32.gmra.mxu0 %v420
        %v554 = vpop.f32.mrf.mxu0
        %v555 = vadd.f32 %v359, %v554
        %556 = vmatmul.f32.gmra.mxu0 %v423
        %v557 = vpop.f32.mrf.mxu0
        %v558 = vadd.f32 %v364, %v557
        %559 = vmatmul.f32.gmra.mxu0 %v426
        %v560 = vpop.f32.mrf.mxu0
        %v561 = vadd.f32 %v369, %v560
        %562 = vmatmul.f32.gmra.mxu0 %v429
        %v563 = vpop.f32.mrf.mxu0
        %v564 = vadd.f32 %v374, %v563
        %565 = vmatmul.f32.gmra.mxu0 %v432
        %v566 = vpop.f32.mrf.mxu0
        %v567 = vadd.f32 %v379, %v566
        %568 = vdwg.mxu0
        %v569 = vmin.f32 %v457, %v463
        %v570 = vmin.f32 %v460, %v466
        %v571 = vmin.f32 %v569, %v469
        %v572 = vmin.f32 %v570, %v472
        %v573 = vmin.f32 %v571, %v475
        %v574 = vmin.f32 %v572, %v478
        %v575 = vmin.f32 %v573, %v481
        %v576 = vmin.f32 %v574, %v484
        %v577 = vmin.f32 %v575, %v487
        %v578 = vmin.f32 %v576, %v490
        %v579 = vmin.f32 %v577, %v493
        %v580 = vmin.f32 %v578, %v496
        %v581 = vmin.f32 %v579, %v499
        %v582 = vmin.f32 %v580, %v502
        %v583 = vmin.f32 %v581, %v582
        %v584 = vrot.slane %v583, 4
        %v585 = vmin.f32 %v583, %v584
        %v586 = vrot.slane %v585, 2
        %v587 = vmin.f32 %v585, %v586
        %v588 = vrot.slane %v587, 1
        %v589 = vmin.f32 %v587, %v588
        %v590 = vmin.f32 %v522, %v528
        %v591 = vmin.f32 %v525, %v531
        %v592 = vmin.f32 %v590, %v534
        %v593 = vmin.f32 %v591, %v537
        %v594 = vmin.f32 %v592, %v540
        %v595 = vmin.f32 %v593, %v543
        %v596 = vmin.f32 %v594, %v546
        %v597 = vmin.f32 %v595, %v549
        %v598 = vmin.f32 %v596, %v552
        %v599 = vmin.f32 %v597, %v555
        %v600 = vmin.f32 %v598, %v558
        %v601 = vmin.f32 %v599, %v561
        %v602 = vmin.f32 %v600, %v564
        %v603 = vmin.f32 %v601, %v567
        %v604 = vmin.f32 %v602, %v603
        %v605 = vrot.slane %v604, 4
        %v606 = vmin.f32 %v604, %v605
        %v607 = vrot.slane %v606, 2
        %v608 = vmin.f32 %v606, %v607
        %v609 = vrot.slane %v608, 1
        %v610 = vmin.f32 %v608, %v609
        %v611 = vlaneseq
        %v612 = vshrl.u32 %v611, 7
        %v613 = vadd.s32 %v612, 8
        %v614 = vadd.s32 %v612, 16
        %v615 = vadd.s32 %v612, 24
        %v616 = vadd.s32 %v612, 32
        %v617 = vadd.s32 %v612, 40
        %v618 = vadd.s32 %v612, 48
        %v619 = vadd.s32 %v612, 56
        %v620 = vadd.s32 %v612, 64
        %v621 = vadd.s32 %v612, 72
        %v622 = vadd.s32 %v612, 80
        %v623 = vadd.s32 %v612, 88
        %v624 = vadd.s32 %v612, 96
        %v625 = vadd.s32 %v612, 104
        %v626 = vadd.s32 %v612, 112
        %v627 = vadd.s32 %v612, 120
        %v628 = vcvt.s32.f32 %v612
        %v629 = vcvt.s32.f32 %v613
        %v630 = vcvt.s32.f32 %v614
        %v631 = vcvt.s32.f32 %v615
        %v632 = vcvt.s32.f32 %v616
        %v633 = vcvt.s32.f32 %v617
        %v634 = vcvt.s32.f32 %v618
        %v635 = vcvt.s32.f32 %v619
        %v636 = vcvt.s32.f32 %v620
        %v637 = vcvt.s32.f32 %v621
        %v638 = vcvt.s32.f32 %v622
        %v639 = vcvt.s32.f32 %v623
        %v640 = vcvt.s32.f32 %v624
        %v641 = vcvt.s32.f32 %v625
        %v642 = vcvt.s32.f32 %v626
        %v643 = vcvt.s32.f32 %v627
        %vm644 = vcmp.eq.f32.partialorder %v457, %v589
        %vm645 = vcmp.eq.f32.partialorder %v522, %v610
        %vm646 = vcmp.eq.f32.partialorder %v460, %v589
        %vm647 = vcmp.eq.f32.partialorder %v525, %v610
        %vm648 = vcmp.eq.f32.partialorder %v463, %v589
        %vm649 = vcmp.eq.f32.partialorder %v528, %v610
        %vm650 = vcmp.eq.f32.partialorder %v466, %v589
        %vm651 = vcmp.eq.f32.partialorder %v531, %v610
        %vm652 = vcmp.eq.f32.partialorder %v469, %v589
        %vm653 = vcmp.eq.f32.partialorder %v534, %v610
        %vm654 = vcmp.eq.f32.partialorder %v472, %v589
        %vm655 = vcmp.eq.f32.partialorder %v537, %v610
        %vm656 = vcmp.eq.f32.partialorder %v475, %v589
        %vm657 = vcmp.eq.f32.partialorder %v540, %v610
        %vm658 = vcmp.eq.f32.partialorder %v478, %v589
        %vm659 = vcmp.eq.f32.partialorder %v543, %v610
        %vm660 = vcmp.eq.f32.partialorder %v481, %v589
        %vm661 = vcmp.eq.f32.partialorder %v546, %v610
        %vm662 = vcmp.eq.f32.partialorder %v484, %v589
        %vm663 = vcmp.eq.f32.partialorder %v549, %v610
        %vm664 = vcmp.eq.f32.partialorder %v487, %v589
        %vm665 = vcmp.eq.f32.partialorder %v552, %v610
        %vm666 = vcmp.eq.f32.partialorder %v490, %v589
        %vm667 = vcmp.eq.f32.partialorder %v555, %v610
        %vm668 = vcmp.eq.f32.partialorder %v493, %v589
        %vm669 = vcmp.eq.f32.partialorder %v558, %v610
        %vm670 = vcmp.eq.f32.partialorder %v496, %v589
        %vm671 = vcmp.eq.f32.partialorder %v561, %v610
        %vm672 = vcmp.eq.f32.partialorder %v499, %v589
        %vm673 = vcmp.eq.f32.partialorder %v564, %v610
        %vm674 = vcmp.eq.f32.partialorder %v502, %v589
        %vm675 = vcmp.eq.f32.partialorder %v567, %v610
        %v676 = vsel %vm644, %v628, 128.0
        %v677 = vsel %vm645, %v628, 128.0
        %v678 = vsel %vm646, %v629, 128.0
        %v679 = vsel %vm647, %v629, 128.0
        %v680 = vsel %vm648, %v630, 128.0
        %v681 = vsel %vm649, %v630, 128.0
        %v682 = vsel %vm650, %v631, 128.0
        %v683 = vsel %vm651, %v631, 128.0
        %v684 = vsel %vm652, %v632, 128.0
        %v685 = vsel %vm653, %v632, 128.0
        %v686 = vsel %vm654, %v633, 128.0
        %v687 = vsel %vm655, %v633, 128.0
        %v688 = vsel %vm656, %v634, 128.0
        %v689 = vsel %vm657, %v634, 128.0
        %v690 = vsel %vm658, %v635, 128.0
        %v691 = vsel %vm659, %v635, 128.0
        %v692 = vsel %vm660, %v636, 128.0
        %v693 = vsel %vm661, %v636, 128.0
        %v694 = vsel %vm662, %v637, 128.0
        %v695 = vsel %vm663, %v637, 128.0
        %v696 = vsel %vm664, %v638, 128.0
        %v697 = vsel %vm665, %v638, 128.0
        %v698 = vsel %vm666, %v639, 128.0
        %v699 = vsel %vm667, %v639, 128.0
        %v700 = vsel %vm668, %v640, 128.0
        %v701 = vsel %vm669, %v640, 128.0
        %v702 = vsel %vm670, %v641, 128.0
        %v703 = vsel %vm671, %v641, 128.0
        %v704 = vsel %vm672, %v642, 128.0
        %v705 = vsel %vm673, %v642, 128.0
        %v706 = vsel %vm674, %v643, 128.0
        %v707 = vsel %vm675, %v643, 128.0
        %v708 = vmin.f32 %v676, %v680
        %v709 = vmin.f32 %v678, %v682
        %v710 = vmin.f32 %v708, %v684
        %v711 = vmin.f32 %v709, %v686
        %v712 = vmin.f32 %v710, %v688
        %v713 = vmin.f32 %v711, %v690
        %v714 = vmin.f32 %v712, %v692
        %v715 = vmin.f32 %v713, %v694
        %v716 = vmin.f32 %v714, %v696
        %v717 = vmin.f32 %v715, %v698
        %v718 = vmin.f32 %v716, %v700
        %v719 = vmin.f32 %v717, %v702
        %v720 = vmin.f32 %v718, %v704
        %v721 = vmin.f32 %v719, %v706
        %v722 = vmin.f32 %v720, %v721
        %v723 = vrot.slane %v722, 4
        %v724 = vmin.f32 %v722, %v723
        %v725 = vrot.slane %v724, 2
        %v726 = vmin.f32 %v724, %v725
        %v727 = vrot.slane %v726, 1
        %v728 = vmin.f32 %v726, %v727
        %v729 = vmin.f32 %v677, %v681
        %v730 = vmin.f32 %v679, %v683
        %v731 = vmin.f32 %v729, %v685
        %v732 = vmin.f32 %v730, %v687
        %v733 = vmin.f32 %v731, %v689
        %v734 = vmin.f32 %v732, %v691
        %v735 = vmin.f32 %v733, %v693
        %v736 = vmin.f32 %v734, %v695
        %v737 = vmin.f32 %v735, %v697
        %v738 = vmin.f32 %v736, %v699
        %v739 = vmin.f32 %v737, %v701
        %v740 = vmin.f32 %v738, %v703
        %v741 = vmin.f32 %v739, %v705
        %v742 = vmin.f32 %v740, %v707
        %v743 = vmin.f32 %v741, %v742
        %v744 = vrot.slane %v743, 4
        %v745 = vmin.f32 %v743, %v744
        %v746 = vrot.slane %v745, 2
        %v747 = vmin.f32 %v745, %v746
        %v748 = vrot.slane %v747, 1
        %v749 = vmin.f32 %v747, %v748
        %v750 = vcvt.f32.s32.to.zero.pseudo %v728
        %v751 = vcvt.f32.s32.to.zero.pseudo %v749
        %vm752 = vcmp.eq.s32.totalorder %v612, %v750
        %vm753 = vcmp.eq.s32.totalorder %v612, %v751
        %vm754 = vcmp.eq.s32.totalorder %v613, %v750
        %vm755 = vcmp.eq.s32.totalorder %v613, %v751
        %vm756 = vcmp.eq.s32.totalorder %v614, %v750
        %vm757 = vcmp.eq.s32.totalorder %v614, %v751
        %vm758 = vcmp.eq.s32.totalorder %v615, %v750
        %vm759 = vcmp.eq.s32.totalorder %v615, %v751
        %vm760 = vcmp.eq.s32.totalorder %v616, %v750
        %vm761 = vcmp.eq.s32.totalorder %v616, %v751
        %vm762 = vcmp.eq.s32.totalorder %v617, %v750
        %vm763 = vcmp.eq.s32.totalorder %v617, %v751
        %vm764 = vcmp.eq.s32.totalorder %v618, %v750
        %vm765 = vcmp.eq.s32.totalorder %v618, %v751
        %vm766 = vcmp.eq.s32.totalorder %v619, %v750
        %vm767 = vcmp.eq.s32.totalorder %v619, %v751
        %vm768 = vcmp.eq.s32.totalorder %v620, %v750
        %vm769 = vcmp.eq.s32.totalorder %v620, %v751
        %vm770 = vcmp.eq.s32.totalorder %v621, %v750
        %vm771 = vcmp.eq.s32.totalorder %v621, %v751
        %vm772 = vcmp.eq.s32.totalorder %v622, %v750
        %vm773 = vcmp.eq.s32.totalorder %v622, %v751
        %vm774 = vcmp.eq.s32.totalorder %v623, %v750
        %vm775 = vcmp.eq.s32.totalorder %v623, %v751
        %vm776 = vcmp.eq.s32.totalorder %v624, %v750
        %vm777 = vcmp.eq.s32.totalorder %v624, %v751
        %vm778 = vcmp.eq.s32.totalorder %v625, %v750
        %vm779 = vcmp.eq.s32.totalorder %v625, %v751
        %vm780 = vcmp.eq.s32.totalorder %v626, %v750
        %vm781 = vcmp.eq.s32.totalorder %v626, %v751
        %vm782 = vcmp.eq.s32.totalorder %v627, %v750
        %vm783 = vcmp.eq.s32.totalorder %v627, %v751
        %v784 = vsel %vm752, 1, 0
        %v785 = vsel %vm753, 1, 0
        %v786 = vsel %vm754, 1, 0
        %v787 = vsel %vm755, 1, 0
        %v788 = vsel %vm756, 1, 0
        %v789 = vsel %vm757, 1, 0
        %v790 = vsel %vm758, 1, 0
        %v791 = vsel %vm759, 1, 0
        %v792 = vsel %vm760, 1, 0
        %v793 = vsel %vm761, 1, 0
        %v794 = vsel %vm762, 1, 0
        %v795 = vsel %vm763, 1, 0
        %v796 = vsel %vm764, 1, 0
        %v797 = vsel %vm765, 1, 0
        %v798 = vsel %vm766, 1, 0
        %v799 = vsel %vm767, 1, 0
        %v800 = vsel %vm768, 1, 0
        %v801 = vsel %vm769, 1, 0
        %v802 = vsel %vm770, 1, 0
        %v803 = vsel %vm771, 1, 0
        %v804 = vsel %vm772, 1, 0
        %v805 = vsel %vm773, 1, 0
        %v806 = vsel %vm774, 1, 0
        %v807 = vsel %vm775, 1, 0
        %v808 = vsel %vm776, 1, 0
        %v809 = vsel %vm777, 1, 0
        %v810 = vsel %vm778, 1, 0
        %v811 = vsel %vm779, 1, 0
        %v812 = vsel %vm780, 1, 0
        %v813 = vsel %vm781, 1, 0
        %v814 = vsel %vm782, 1, 0
        %v815 = vsel %vm783, 1, 0
        %v816 = vcvt.s32.f32 %v784
        %v817 = vcvt.s32.f32 %v785
        %v818 = vcvt.s32.f32 %v786
        %v819 = vcvt.s32.f32 %v787
        %v820 = vcvt.s32.f32 %v788
        %v821 = vcvt.s32.f32 %v789
        %v822 = vcvt.s32.f32 %v790
        %v823 = vcvt.s32.f32 %v791
        %v824 = vcvt.s32.f32 %v792
        %v825 = vcvt.s32.f32 %v793
        %v826 = vcvt.s32.f32 %v794
        %v827 = vcvt.s32.f32 %v795
        %v828 = vcvt.s32.f32 %v796
        %v829 = vcvt.s32.f32 %v797
        %v830 = vcvt.s32.f32 %v798
        %v831 = vcvt.s32.f32 %v799
        %v832 = vcvt.s32.f32 %v800
        %v833 = vcvt.s32.f32 %v801
        %v834 = vcvt.s32.f32 %v802
        %v835 = vcvt.s32.f32 %v803
        %v836 = vcvt.s32.f32 %v804
        %v837 = vcvt.s32.f32 %v805
        %v838 = vcvt.s32.f32 %v806
        %v839 = vcvt.s32.f32 %v807
        %v840 = vcvt.s32.f32 %v808
        %v841 = vcvt.s32.f32 %v809
        %v842 = vcvt.s32.f32 %v810
        %v843 = vcvt.s32.f32 %v811
        %v844 = vcvt.s32.f32 %v812
        %v845 = vcvt.s32.f32 %v813
        %v846 = vcvt.s32.f32 %v814
        %v847 = vcvt.s32.f32 %v815
        %v848 = vld [vmem:[%s3] sm:$0xf]
        %849 = vmatpush.msra.mxu0 %v846
        %850 = vmatpush.msra.mxu0 %v844
        %851 = vmatpush.msra.mxu0 %v842
        %852 = vmatpush.msra.mxu0 %v840
        %853 = vmatpush.msra.mxu0 %v838
        %854 = vmatpush.msra.mxu0 %v836
        %855 = vmatpush.msra.mxu0 %v834
        %856 = vmatpush.msra.mxu0 %v832
        %857 = vmatpush.msra.mxu0 %v830
        %858 = vmatpush.msra.mxu0 %v828
        %859 = vmatpush.msra.mxu0 %v826
        %860 = vmatpush.msra.mxu0 %v824
        %861 = vmatpush.msra.mxu0 %v822
        %862 = vmatpush.msra.mxu0 %v820
        %863 = vmatpush.msra.mxu0 %v818
        %864 = vmatpush.msra.mxu0 %v816
        %865 = vmatmul.f32.gmra.mxu0 %v848
        %v866 = vpop.f32.mrf.mxu0
        %v867 = vadd.f32 0.0, %v866
        %868 = vdwg.mxu0
        %869 = vmatpush.msra.mxu0 %v847
        %870 = vmatpush.msra.mxu0 %v845
        %871 = vmatpush.msra.mxu0 %v843
        %872 = vmatpush.msra.mxu0 %v841
        %873 = vmatpush.msra.mxu0 %v839
        %874 = vmatpush.msra.mxu0 %v837
        %875 = vmatpush.msra.mxu0 %v835
        %876 = vmatpush.msra.mxu0 %v833
        %877 = vmatpush.msra.mxu0 %v831
        %878 = vmatpush.msra.mxu0 %v829
        %879 = vmatpush.msra.mxu0 %v827
        %880 = vmatpush.msra.mxu0 %v825
        %881 = vmatpush.msra.mxu0 %v823
        %882 = vmatpush.msra.mxu0 %v821
        %883 = vmatpush.msra.mxu0 %v819
        %884 = vmatpush.msra.mxu0 %v817
        %885 = vmatmul.f32.gmra.mxu0 %v848
        %v886 = vpop.f32.mrf.mxu0
        %v887 = vadd.f32 0.0, %v886
        %888 = vdwg.mxu0
        %v891 = vrot.slane %v887, 4
        %v892 = vsel %vm434, %v867, %v891
        %894 = vst [vmem:[%s248] sm:$0xff] %v892
        %v895 = vrot.slane %v751, 7
        %vm896 = vcmask 1040384
        %v897 = vsel %vm896, %v750, %v895
        %v898 = vlaneseq
        %vm899 = vcmp.ge.s32.totalorder %v898, 0
        %vm900 = vcmp.lt.s32.totalorder %v898, 256
        %vm901 = vmand %vm899, %vm900
        %902 = vst.msk [vmem:[%s255] sm:$0x3] %vm901, %v897
        %s903 = sand.u32 %s136, 1
        %s904 = scalar_lea.sflag [#allocation3], %s903
        %s905 = sand.u32 %s136, 1
        %s906 = smul.addr %s905, 8
        %s907 = scalar_lea.vmem [#allocation2], %s906
        %s908 = sand.u32 %s164, 1
        %s909 = scalar_lea.sflag [#allocation5], %s908
        %s910 = sand.u32 %s164, 1
        %s911 = smul.addr %s910, 2
        %s912 = scalar_lea.vmem [#allocation4], %s911
        // Predicated region
        $region37: #{tpu_custom_call.1} parent=35 // pred_check
          %p913 = pneg %p146
        $region38: #{tpu_custom_call.1} parent=35 // pred_check_branch
          %915 = sbr.rel (%p913) target = $region40
        $region39: #{tpu_custom_call.1} parent=35 // pred_region
          %s916 = smul.u32 2, %s28
          %918 = vsyncadd %s904, 0
          %s919 = smul.addr %s27, 2
          %s920 = sadd.s32 %s916, %s919
          %s921 = smul.addr %s920, 4
          %s922 = scalar_lea.hbm %s4, %s921
          %s924 = sshll.u32 %s907, 4
          %s925 = int_to_ptr.vmem [resolvable:$true] %s924
          %s926 = sshll.u32 %s922, 4
          %s927 = int_to_ptr.hbm [resolvable:$true] %s926
          %929 = dma.vmem_to_hbm [thread:$0]  %s925, 128, %s927, %s904
        $region40: #{tpu_custom_call.1} parent=35 // pred_fallthru
          _
        // Predicated region
        $region41: #{tpu_custom_call.1} parent=35 // pred_check
          %p930 = pneg %p174
        $region42: #{tpu_custom_call.1} parent=35 // pred_check_branch
          %932 = sbr.rel (%p930) target = $region44
        $region43: #{tpu_custom_call.1} parent=35 // pred_region
          %s933 = smul.u32 2, %s28
          %935 = vsyncadd %s909, 0
          %s936 = smul.addr %s27, 2
          %s937 = sadd.s32 %s933, %s936
          %s938 = scalar_lea.hbm %s5, %s937
          %s940 = sshll.u32 %s912, 4
          %s941 = int_to_ptr.vmem [resolvable:$true] %s940
          %s942 = sshll.u32 %s938, 4
          %s943 = int_to_ptr.hbm [resolvable:$true] %s942
          %945 = dma.vmem_to_hbm [thread:$0]  %s941, 32, %s943, %s909
        $region44: #{tpu_custom_call.1} parent=35 // pred_fallthru
          _
      $region36: #{tpu_custom_call.1} parent=5 // pred_fallthru
        _
      %p946 = scmp.le.s32.totalorder 2, %s18
      // Predicated region
      $region45: #{tpu_custom_call.1} parent=5 // pred_check
        %p947 = pneg %p946
      $region46: #{tpu_custom_call.1} parent=5 // pred_check_branch
        %949 = sbr.rel (%p947) target = $region48
      $region47: #{tpu_custom_call.1} parent=5 // pred_region
        %s950 = ssub.s32 %s18, 2
        // Predicated region
        $region49: #{tpu_custom_call.1} parent=47 // pred_check
          %p951 = pneg %p152
        $region50: #{tpu_custom_call.1} parent=47 // pred_check_branch
          %953 = sbr.rel (%p951) target = $region52
        $region51: #{tpu_custom_call.1} parent=47 // pred_region
          %s954 = sand.u32 %s137, 1
          %s955 = scalar_lea.sflag [#allocation3], %s954
          %s956 = sand.u32 %s137, 1
          %s957 = smul.addr %s956, 8
          %s958 = scalar_lea.vmem [#allocation2], %s957
          %960 = dma.done %s955, 128
        $region52: #{tpu_custom_call.1} parent=47 // pred_fallthru
          _
        // Predicated region
        $region53: #{tpu_custom_call.1} parent=47 // pred_check
          %p961 = pneg %p180
        $region54: #{tpu_custom_call.1} parent=47 // pred_check_branch
          %963 = sbr.rel (%p961) target = $region56
        $region55: #{tpu_custom_call.1} parent=47 // pred_region
          %s964 = sand.u32 %s165, 1
          %s965 = scalar_lea.sflag [#allocation5], %s964
          %s966 = sand.u32 %s165, 1
          %s967 = smul.addr %s966, 2
          %s968 = scalar_lea.vmem [#allocation4], %s967
          %970 = dma.done %s965, 32
        $region56: #{tpu_custom_call.1} parent=47 // pred_fallthru
          _
      $region48: #{tpu_custom_call.1} parent=5 // pred_fallthru
        _
    $region6: #{tpu_custom_call.1} parent=1 // loop_footer
      %s22 = sadd.s32 1, %s18
    $region7: #{tpu_custom_call.1} parent=1 // loop_footer_branch
      %17 = sbr.rel target = $region3
    $region8: #{tpu_custom_call.1} parent=1 // loop_exit
      _
    %971 = vsyncpa [#allocation3], 1
    %s972 = scalar_lea.sflag [#allocation3], 1
    %973 = vsyncpa %s972, 1
    %974 = vsyncpa [#allocation5], 1
    %s975 = scalar_lea.sflag [#allocation5], 1
    %976 = vsyncpa %s975, 1

</llo_original>
